<compile_context>
chip_gen: v6e
topology: v6e:2x2x1
jax: 0.10.0
libtpu: 0.0.40
codegen_flags: <defaults>
</compile_context>

<pallas_src>
import functools

import jax
import jax.numpy as jnp
import numpy as np
from jax.experimental import pallas as pl
from jax.experimental.pallas import tpu as pltpu


# ----------------------------------------------------------------------------
# Fused kernel: projections + relation-aware attention + message passing + update
# Grid: (num_dst_tiles,).  Src side (all N nodes) is precomputed at step 0 into
# persistent VMEM scratch; each step handles one destination-node tile.
# ----------------------------------------------------------------------------
def _hgt_fused_kernel(x_ref, nt_ref, adj_ref, et_ref, w_ref, ratt_ref, rmsg_ref,
                      bias_ref, out_ref,
                      q_sc, loop_sc, katt_sc, mmsg_sc, acc_sc,
                      *, num_heads, d_k, num_node_types, num_edge_types):
    n_src, hidden = q_sc.shape
    dst_tile = out_ref.shape[0]
    j = pl.program_id(0)

    # ---- step 0: src-side projections + relation transforms (persist in VMEM) ----
    @pl.when(j == 0)
    def _precompute_src_side():
        xb = x_ref[...]                                   # (N, Din) bf16
        nt = nt_ref[...]                                  # (N, T_n) f32 one-hot
        kqvl = jnp.zeros((n_src, 4 * hidden), jnp.float32)
        for t in range(num_node_types):                   # small static loop
            # mask rows on the narrow (Din) input side, not the 4*hidden output
            x_t = xb * nt[:, t:t + 1].astype(xb.dtype)    # exact 0/1 mask in bf16
            kqvl = kqvl + jnp.dot(x_t, w_ref[t],
                                  preferred_element_type=jnp.float32)
        k = kqvl[:, 0:hidden].astype(jnp.bfloat16)
        q_sc[...] = kqvl[:, hidden:2 * hidden].astype(jnp.bfloat16)
        v = kqvl[:, 2 * hidden:3 * hidden].astype(jnp.bfloat16)
        # self-loop term with bias folded in once -> per-tile epilogue is one add
        loop_sc[...] = kqvl[:, 3 * hidden:4 * hidden] + bias_ref[...]
        for t in range(num_edge_types):
            # block-diagonal over heads; r_pri * scale already folded in host-side
            katt_sc[t] = jnp.dot(k, ratt_ref[t],
                                 preferred_element_type=jnp.float32).astype(jnp.bfloat16)
            mmsg_sc[t] = jnp.dot(v, rmsg_ref[t],
                                 preferred_element_type=jnp.float32).astype(jnp.bfloat16)

    # ---- per-destination-tile attention / aggregation / node update ----
    start = pl.multiple_of(j * dst_tile, dst_tile)
    q_t = q_sc[pl.ds(start, dst_tile), :]                 # (TD, hidden) bf16
    loop_t = loop_sc[pl.ds(start, dst_tile), :]           # (TD, hidden) f32

    adj = adj_ref[...]                                    # (N_src, TD) f32 0/1
    et = et_ref[...]                                      # (N_src, TD) int32 codes
    # mask bias: 0 on edges, -1e30 off edges (hoisted out of the head loop)
    neg_bias = (adj - 1.0) * jnp.float32(1e30)
    # edge-type selection masks hoisted out of the head loop (computed once/tile)
    et_mask = [(et == t).astype(jnp.float32) for t in range(num_edge_types)]

    # src-side transformed K / messages (already in VMEM scratch)
    katt = [katt_sc[t] for t in range(num_edge_types)]    # (N_src, hidden) bf16
    mmsg = [mmsg_sc[t] for t in range(num_edge_types)]

    for h in range(num_heads):
        lo, hi = h * d_k, (h + 1) * d_k
        q_h = q_t[:, lo:hi]                               # (TD, d_k) bf16

        # attention logits (edge-type selected via hoisted 0/1 mask)
        score = neg_bias
        for t in range(num_edge_types):
            s_t = jax.lax.dot_general(
                katt[t][:, lo:hi], q_h,
                dimension_numbers=(((1,), (1,)), ((), ())),
                preferred_element_type=jnp.float32)       # (N_src, TD)
            score = score + s_t * et_mask[t]

        # masked edge-softmax over incoming edges (src axis) of each dst
        m = jnp.max(score, axis=0, keepdims=True)
        p = jnp.exp(score - m) * adj
        denom = jnp.sum(p, axis=0, keepdims=True)
        a = p * pl.reciprocal(jnp.maximum(denom, jnp.float32(1e-30)), approx=True)

        # message aggregation
        agg_h = jnp.zeros((dst_tile, d_k), jnp.float32)
        for t in range(num_edge_types):
            w_t = (a * et_mask[t]).astype(jnp.bfloat16)
            agg_h = agg_h + jax.lax.dot_general(
                w_t, mmsg[t][:, lo:hi],
                dimension_numbers=(((0,), (0,)), ((), ())),
                preferred_element_type=jnp.float32)       # (TD, d_k)
        acc_sc[:, lo:hi] = agg_h                          # static-offset head write

    # node update: agg + (self-loop + bias), relu; single lane-dense output store
    out_ref[...] = jnp.maximum(acc_sc[...] + loop_t, jnp.float32(0.0))
    # TODO(synk): dropout(p=0.0) and BatchNorm1d (batch_norm=False) are identities.


# ----------------------------------------------------------------------------
# Host wrapper: parameter packing + fused pallas_call
# ----------------------------------------------------------------------------
def _block_diag_heads(r):
    """(T, H, d, d) -> (T, H*d, H*d) block-diagonal over heads."""
    t_e, n_h, dk, _ = r.shape
    eye = jnp.eye(n_h, dtype=r.dtype)                     # (H, H)
    bd = eye[None, :, None, :, None] * r[:, :, :, None, :]
    return bd.reshape(t_e, n_h * dk, n_h * dk)


def hgt_layer_forward(x, nt_onehot, adj, et_codes, params,
                      *, num_heads, num_node_types, num_edge_types,
                      dst_tile=None):
    N, input_dim = x.shape
    hidden = params["Wk"].shape[-1]
    assert hidden % num_heads == 0
    d_k = hidden // num_heads
    scale = float((hidden / num_heads) ** (-0.5))

    # fold r_pri * scale into r_att, block-diagonalize over heads (bf16 for MXU)
    r_att_s = params["r_att"] * (params["r_pri"] * scale)[:, :, None, None]
    ratt_bd = _block_diag_heads(r_att_s).astype(jnp.bfloat16)        # (T_e, hid, hid)
    rmsg_bd = _block_diag_heads(params["r_msg"]).astype(jnp.bfloat16)

    # concat k|q|v|loop projection weights -> one matmul per node type
    wloop_t = jnp.broadcast_to(params["Wloop"][None],
                               (num_node_types, input_dim, hidden))
    wkqvl = jnp.concatenate(
        [params["Wk"], params["Wq"], params["Wv"], wloop_t],
        axis=-1).astype(jnp.bfloat16)                                # (T_n, Din, 4*hid)

    bias2 = params["bias"].reshape(1, hidden).astype(jnp.float32)
    x_bf = x.astype(jnp.bfloat16)
    et_codes = et_codes.astype(jnp.int32)
    adj = adj.astype(jnp.float32)

    if dst_tile is None:
        dst_tile = N if N <= 256 else 256
    assert N % dst_tile == 0
    n_tiles = N // dst_tile

    grid_spec = pltpu.PrefetchScalarGridSpec(
        num_scalar_prefetch=0,
        grid=(n_tiles,),
        in_specs=[
            pl.BlockSpec((N, input_dim), lambda j: (0, 0)),              # x (resident)
            pl.BlockSpec((N, num_node_types), lambda j: (0, 0)),         # node-type 1hot
            pl.BlockSpec((N, dst_tile), lambda j: (0, j)),               # adj dst tile
            pl.BlockSpec((N, dst_tile), lambda j: (0, j)),               # edge-type codes
            pl.BlockSpec((num_node_types, input_dim, 4 * hidden), lambda j: (0, 0, 0)),
            pl.BlockSpec((num_edge_types, hidden, hidden), lambda j: (0, 0, 0)),
            pl.BlockSpec((num_edge_types, hidden, hidden), lambda j: (0, 0, 0)),
            pl.BlockSpec((1, hidden), lambda j: (0, 0)),                 # bias
        ],
        out_specs=pl.BlockSpec((dst_tile, hidden), lambda j: (j, 0)),
        scratch_shapes=[
            pltpu.VMEM((N, hidden), jnp.bfloat16),                       # q (all nodes)
            pltpu.VMEM((N, hidden), jnp.float32),                        # self-loop + bias
            pltpu.VMEM((num_edge_types, N, hidden), jnp.bfloat16),       # k @ r_att*pri*scale
            pltpu.VMEM((num_edge_types, N, hidden), jnp.bfloat16),       # v @ r_msg
            pltpu.VMEM((dst_tile, hidden), jnp.float32),                 # per-tile head acc
        ],
    )

    return pl.pallas_call(
        functools.partial(_hgt_fused_kernel, num_heads=num_heads, d_k=d_k,
                          num_node_types=num_node_types,
                          num_edge_types=num_edge_types),
        out_shape=jax.ShapeDtypeStruct((N, hidden), jnp.float32),
        grid_spec=grid_spec,
        compiler_params=pltpu.CompilerParams(
            # "arbitrary": step 0 fills persistent src-side scratch reused by
            # later dst tiles on the same core.
            dimension_semantics=("arbitrary",),
            vmem_limit_bytes=32 * 1024 * 1024),
    )(x_bf, nt_onehot, adj, et_codes, wkqvl, ratt_bd, rmsg_bd, bias2)


# ----------------------------------------------------------------------------
# Pure-JAX reference (mirrors the PyTorch/DGL semantics, f32 everywhere)
# ----------------------------------------------------------------------------
def reference_forward(x, nt, adj, et_mat, params, *, num_heads):
    N, _ = x.shape
    hidden = params["Wk"].shape[-1]
    d_k = hidden // num_heads
    scale = float((hidden / num_heads) ** (-0.5))

    k = jnp.einsum("nd,ndo->no", x, params["Wk"][nt]).reshape(N, num_heads, d_k)
    q = jnp.einsum("nd,ndo->no", x, params["Wq"][nt]).reshape(N, num_heads, d_k)
    v = jnp.einsum("nd,ndo->no", x, params["Wv"][nt]).reshape(N, num_heads, d_k)
    loop_h = x @ params["Wloop"]

    r_att_e = params["r_att"][et_mat]                       # (src, dst, H, dk, dk)
    r_msg_e = params["r_msg"][et_mat]
    r_pri_e = params["r_pri"][et_mat]                       # (src, dst, H)

    Kp = jnp.einsum("ihd,ijhde->ijhe", k, r_att_e)          # (src, dst, H, dk)
    e = (q[None, :, :, :] * Kp).sum(-1) * r_pri_e * scale   # (src, dst, H)

    masked = jnp.where(adj[..., None] > 0, e, -1e30)
    m = masked.max(axis=0, keepdims=True)
    p = jnp.exp(masked - m) * adj[..., None]
    a = p / jnp.maximum(p.sum(axis=0, keepdims=True), 1e-30)

    M = jnp.einsum("ihd,ijhde->ijhe", v, r_msg_e)
    agg = (a[..., None] * M).sum(axis=0)                    # (dst, H, dk)
    out = agg.reshape(N, hidden) + loop_h + params["bias"]
    return jax.nn.relu(out)


# ----------------------------------------------------------------------------
# Main
# ----------------------------------------------------------------------------
if __name__ == "__main__":
    # small shapes consistent with the module
    N = 16                 # nodes
    input_dim = 32
    hidden_dim = 32
    num_heads = 2
    d_k = hidden_dim // num_heads
    num_node_types = 2
    num_edge_types = 2
    num_bases = 2

    key = jax.random.PRNGKey(0)
    ks = jax.random.split(key, 12)

    def basis_weight(kc, kb):
        # basis-decomposed weights: w_comp (T_n, B), bases (B, Din, hidden)
        w_comp = jax.random.uniform(kc, (num_node_types, num_bases), jnp.float32, -0.3, 0.3)
        bases = jax.random.uniform(kb, (num_bases, input_dim, hidden_dim), jnp.float32, -0.1, 0.1)
        return jnp.einsum("tb,bio->tio", w_comp, bases)      # (T_n, Din, hidden)

    params = {
        "Wk": basis_weight(ks[0], ks[1]),
        "Wq": basis_weight(ks[2], ks[3]),
        "Wv": basis_weight(ks[4], ks[5]),
        "Wloop": jax.random.uniform(ks[6], (input_dim, hidden_dim), jnp.float32, -0.1, 0.1),
        "r_att": jax.random.uniform(ks[7], (num_edge_types, num_heads, d_k, d_k), jnp.float32, -0.2, 0.2),
        "r_msg": jax.random.uniform(ks[8], (num_edge_types, num_heads, d_k, d_k), jnp.float32, -0.2, 0.2),
        # PyTorch __init__ uses ones/zeros here; randomized (deterministically)
        # to exercise the broadcast paths of this synthetic harness.
        "r_pri": jax.random.uniform(ks[9], (num_edge_types, num_heads), jnp.float32, 0.5, 1.5),
        "bias": jax.random.uniform(ks[10], (hidden_dim,), jnp.float32, -0.05, 0.05),
    }
    # NOTE: a_transform exists in the module but is unused in forward -> omitted.

    kg = jax.random.split(ks[11], 4)
    x = jax.random.normal(kg[0], (N, input_dim), jnp.float32)
    nt = jax.random.randint(kg[1], (N,), 0, num_node_types)
    nt_onehot = jax.nn.one_hot(nt, num_node_types, dtype=jnp.float32)

    # dense graph: random edges + a ring so every node has >=1 incoming edge
    rand_mask = (jax.random.uniform(kg[2], (N, N)) < 0.3).astype(jnp.float32)
    ring = jnp.roll(jnp.eye(N, dtype=jnp.float32), 1, axis=1)   # edge i -> i+1
    adj = jnp.maximum(rand_mask * (1.0 - jnp.eye(N, dtype=jnp.float32)), ring)
    et_mat = jax.random.randint(kg[3], (N, N), 0, num_edge_types)  # int edge-type codes

    out = hgt_layer_forward(x, nt_onehot, adj, et_mat, params,
                            num_heads=num_heads,
                            num_node_types=num_node_types,
                            num_edge_types=num_edge_types)
    out = jax.block_until_ready(out)

    ref = reference_forward(x, nt, adj, et_mat, params, num_heads=num_heads)
    # bf16 MXU operands with f32 accumulation -> loose-but-safe tolerance vs f32 ref
    np.testing.assert_allclose(np.asarray(out), np.asarray(ref), rtol=5e-2, atol=2e-2)

    print("KERNEL_OK")
</pallas_src>

<mosaic_0001>
module attributes {stable_mosaic.version = 11 : i64} {
  func.func @_hgt_fused_kernel(%arg0: i32, %arg1: memref<16x32xbf16, #tpu.memory_space<vmem>>, %arg2: memref<16x2xf32, #tpu.memory_space<vmem>>, %arg3: memref<16x16xf32, #tpu.memory_space<vmem>>, %arg4: memref<16x16xi32, #tpu.memory_space<vmem>>, %arg5: memref<2x32x128xbf16, #tpu.memory_space<vmem>>, %arg6: memref<2x32x32xbf16, #tpu.memory_space<vmem>>, %arg7: memref<2x32x32xbf16, #tpu.memory_space<vmem>>, %arg8: memref<1x32xf32, #tpu.memory_space<vmem>>, %arg9: memref<16x32xf32, #tpu.memory_space<vmem>>, %arg10: memref<16x32xbf16, #tpu.memory_space<vmem>>, %arg11: memref<16x32xf32, #tpu.memory_space<vmem>>, %arg12: memref<2x16x32xbf16, #tpu.memory_space<vmem>>, %arg13: memref<2x16x32xbf16, #tpu.memory_space<vmem>>, %arg14: memref<16x32xf32, #tpu.memory_space<vmem>>) attributes {dimension_semantics = [#tpu.dimension_semantics<arbitrary>], iteration_bounds = array<i64: 1>, scalar_prefetch = 0 : i64, scratch_operands = 5 : i64, tpu.core_type = #tpu.core_type<tc>, window_params = [{pipeline_mode = #tpu.pipeline_mode<synchronous>, transform_indices = @transform_0, window_bounds = array<i64: 16, 32>}, {pipeline_mode = #tpu.pipeline_mode<synchronous>, transform_indices = @transform_1, window_bounds = array<i64: 16, 2>}, {transform_indices = @transform_2, window_bounds = array<i64: 16, 16>}, {transform_indices = @transform_3, window_bounds = array<i64: 16, 16>}, {pipeline_mode = #tpu.pipeline_mode<synchronous>, transform_indices = @transform_4, window_bounds = array<i64: 2, 32, 128>}, {pipeline_mode = #tpu.pipeline_mode<synchronous>, transform_indices = @transform_5, window_bounds = array<i64: 2, 32, 32>}, {pipeline_mode = #tpu.pipeline_mode<synchronous>, transform_indices = @transform_6, window_bounds = array<i64: 2, 32, 32>}, {pipeline_mode = #tpu.pipeline_mode<synchronous>, transform_indices = @transform_7, window_bounds = array<i64: 1, 32>}, {transform_indices = @transform_8, window_bounds = array<i64: 16, 32>}]} {
    %c0_i32 = arith.constant 0 : i32
    %0 = arith.cmpi eq, %arg0, %c0_i32 : i32
    %1 = arith.extui %0 : i1 to i32
    %c0_i32_0 = arith.constant 0 : i32
    %2 = arith.cmpi ne, %1, %c0_i32_0 : i32
    scf.if %2 {
      %c0_43 = arith.constant 0 : index
      %c0_44 = arith.constant 0 : index
      %104 = vector.load %arg1[%c0_43, %c0_44] : memref<16x32xbf16, #tpu.memory_space<vmem>>, vector<16x32xbf16>
      %c0_45 = arith.constant 0 : index
      %c0_46 = arith.constant 0 : index
      %105 = vector.load %arg2[%c0_45, %c0_46] : memref<16x2xf32, #tpu.memory_space<vmem>>, vector<16x2xf32>
      %cst_47 = arith.constant 0.000000e+00 : f32
      %106 = vector.broadcast %cst_47 : f32 to vector<16x128xf32>
      %107 = vector.extract_strided_slice %105 {offsets = [0, 0], sizes = [16, 1], strides = [1, 1]} : vector<16x2xf32> to vector<16x1xf32>
      %108 = arith.truncf %107 : vector<16x1xf32> to vector<16x1xbf16>
      %109 = vector.broadcast %108 : vector<16x1xbf16> to vector<16x32xbf16>
      %110 = arith.mulf %104, %109 : vector<16x32xbf16>
      %c0_48 = arith.constant 0 : index
      %c0_49 = arith.constant 0 : index
      %c0_50 = arith.constant 0 : index
      %111 = vector.load %arg5[%c0_48, %c0_49, %c0_50] : memref<2x32x128xbf16, #tpu.memory_space<vmem>>, vector<1x32x128xbf16>
      %112 = vector.shape_cast %111 : vector<1x32x128xbf16> to vector<32x128xbf16>
      %cst_51 = arith.constant dense<0.000000e+00> : vector<16x128xf32>
      %113 = tpu.matmul %110, %112, %cst_51 {dimension_numbers = #tpu.dot_dimension_numbers<[1], [0], [0], [1], [0, 0, 1, 1], [], []>} : vector<16x32xbf16>, vector<32x128xbf16>, vector<16x128xf32> -> vector<16x128xf32>
      %114 = arith.addf %106, %113 : vector<16x128xf32>
      %115 = vector.extract_strided_slice %105 {offsets = [0, 1], sizes = [16, 1], strides = [1, 1]} : vector<16x2xf32> to vector<16x1xf32>
      %116 = arith.truncf %115 : vector<16x1xf32> to vector<16x1xbf16>
      %117 = vector.broadcast %116 : vector<16x1xbf16> to vector<16x32xbf16>
      %118 = arith.mulf %104, %117 : vector<16x32xbf16>
      %c1_52 = arith.constant 1 : index
      %c0_53 = arith.constant 0 : index
      %c0_54 = arith.constant 0 : index
      %119 = vector.load %arg5[%c1_52, %c0_53, %c0_54] : memref<2x32x128xbf16, #tpu.memory_space<vmem>>, vector<1x32x128xbf16>
      %120 = vector.shape_cast %119 : vector<1x32x128xbf16> to vector<32x128xbf16>
      %cst_55 = arith.constant dense<0.000000e+00> : vector<16x128xf32>
      %121 = tpu.matmul %118, %120, %cst_55 {dimension_numbers = #tpu.dot_dimension_numbers<[1], [0], [0], [1], [0, 0, 1, 1], [], []>} : vector<16x32xbf16>, vector<32x128xbf16>, vector<16x128xf32> -> vector<16x128xf32>
      %122 = arith.addf %114, %121 : vector<16x128xf32>
      %123 = vector.extract_strided_slice %122 {offsets = [0, 0], sizes = [16, 32], strides = [1, 1]} : vector<16x128xf32> to vector<16x32xf32>
      %124 = arith.truncf %123 : vector<16x32xf32> to vector<16x32xbf16>
      %125 = vector.extract_strided_slice %122 {offsets = [0, 32], sizes = [16, 32], strides = [1, 1]} : vector<16x128xf32> to vector<16x32xf32>
      %126 = arith.truncf %125 : vector<16x32xf32> to vector<16x32xbf16>
      %c0_56 = arith.constant 0 : index
      %c0_57 = arith.constant 0 : index
      %127 = vector.load %arg10[%c0_56, %c0_57] : memref<16x32xbf16, #tpu.memory_space<vmem>>, vector<16x32xbf16>
      tpu.vector_store %arg10[%c0_56, %c0_57], %126 {strides = array<i32>} : memref<16x32xbf16, #tpu.memory_space<vmem>>, vector<16x32xbf16>,
      %128 = vector.extract_strided_slice %122 {offsets = [0, 64], sizes = [16, 32], strides = [1, 1]} : vector<16x128xf32> to vector<16x32xf32>
      %129 = arith.truncf %128 : vector<16x32xf32> to vector<16x32xbf16>
      %130 = vector.extract_strided_slice %122 {offsets = [0, 96], sizes = [16, 32], strides = [1, 1]} : vector<16x128xf32> to vector<16x32xf32>
      %c0_58 = arith.constant 0 : index
      %c0_59 = arith.constant 0 : index
      %131 = vector.load %arg8[%c0_58, %c0_59] : memref<1x32xf32, #tpu.memory_space<vmem>>, vector<1x32xf32>
      %132 = vector.broadcast %131 : vector<1x32xf32> to vector<16x32xf32>
      %133 = arith.addf %130, %132 : vector<16x32xf32>
      %c0_60 = arith.constant 0 : index
      %c0_61 = arith.constant 0 : index
      %134 = vector.load %arg11[%c0_60, %c0_61] : memref<16x32xf32, #tpu.memory_space<vmem>>, vector<16x32xf32>
      tpu.vector_store %arg11[%c0_60, %c0_61], %133 {strides = array<i32>} : memref<16x32xf32, #tpu.memory_space<vmem>>, vector<16x32xf32>,
      %c0_62 = arith.constant 0 : index
      %c0_63 = arith.constant 0 : index
      %c0_64 = arith.constant 0 : index
      %135 = vector.load %arg6[%c0_62, %c0_63, %c0_64] : memref<2x32x32xbf16, #tpu.memory_space<vmem>>, vector<1x32x32xbf16>
      %136 = vector.shape_cast %135 : vector<1x32x32xbf16> to vector<32x32xbf16>
      %cst_65 = arith.constant dense<0.000000e+00> : vector<16x32xf32>
      %137 = tpu.matmul %124, %136, %cst_65 {dimension_numbers = #tpu.dot_dimension_numbers<[1], [0], [0], [1], [0, 0, 1, 1], [], []>} : vector<16x32xbf16>, vector<32x32xbf16>, vector<16x32xf32> -> vector<16x32xf32>
      %138 = arith.truncf %137 : vector<16x32xf32> to vector<16x32xbf16>
      %c0_66 = arith.constant 0 : index
      %c0_67 = arith.constant 0 : index
      %c0_68 = arith.constant 0 : index
      %139 = vector.load %arg12[%c0_66, %c0_67, %c0_68] : memref<2x16x32xbf16, #tpu.memory_space<vmem>>, vector<1x16x32xbf16>
      %140 = vector.shape_cast %139 : vector<1x16x32xbf16> to vector<16x32xbf16>
      %141 = vector.shape_cast %138 : vector<16x32xbf16> to vector<1x16x32xbf16>
      tpu.vector_store %arg12[%c0_66, %c0_67, %c0_68], %141 {strides = array<i32>} : memref<2x16x32xbf16, #tpu.memory_space<vmem>>, vector<1x16x32xbf16>,
      %c0_69 = arith.constant 0 : index
      %c0_70 = arith.constant 0 : index
      %c0_71 = arith.constant 0 : index
      %142 = vector.load %arg7[%c0_69, %c0_70, %c0_71] : memref<2x32x32xbf16, #tpu.memory_space<vmem>>, vector<1x32x32xbf16>
      %143 = vector.shape_cast %142 : vector<1x32x32xbf16> to vector<32x32xbf16>
      %cst_72 = arith.constant dense<0.000000e+00> : vector<16x32xf32>
      %144 = tpu.matmul %129, %143, %cst_72 {dimension_numbers = #tpu.dot_dimension_numbers<[1], [0], [0], [1], [0, 0, 1, 1], [], []>} : vector<16x32xbf16>, vector<32x32xbf16>, vector<16x32xf32> -> vector<16x32xf32>
      %145 = arith.truncf %144 : vector<16x32xf32> to vector<16x32xbf16>
      %c0_73 = arith.constant 0 : index
      %c0_74 = arith.constant 0 : index
      %c0_75 = arith.constant 0 : index
      %146 = vector.load %arg13[%c0_73, %c0_74, %c0_75] : memref<2x16x32xbf16, #tpu.memory_space<vmem>>, vector<1x16x32xbf16>
      %147 = vector.shape_cast %146 : vector<1x16x32xbf16> to vector<16x32xbf16>
      %148 = vector.shape_cast %145 : vector<16x32xbf16> to vector<1x16x32xbf16>
      tpu.vector_store %arg13[%c0_73, %c0_74, %c0_75], %148 {strides = array<i32>} : memref<2x16x32xbf16, #tpu.memory_space<vmem>>, vector<1x16x32xbf16>,
      %c1_76 = arith.constant 1 : index
      %c0_77 = arith.constant 0 : index
      %c0_78 = arith.constant 0 : index
      %149 = vector.load %arg6[%c1_76, %c0_77, %c0_78] : memref<2x32x32xbf16, #tpu.memory_space<vmem>>, vector<1x32x32xbf16>
      %150 = vector.shape_cast %149 : vector<1x32x32xbf16> to vector<32x32xbf16>
      %cst_79 = arith.constant dense<0.000000e+00> : vector<16x32xf32>
      %151 = tpu.matmul %124, %150, %cst_79 {dimension_numbers = #tpu.dot_dimension_numbers<[1], [0], [0], [1], [0, 0, 1, 1], [], []>} : vector<16x32xbf16>, vector<32x32xbf16>, vector<16x32xf32> -> vector<16x32xf32>
      %152 = arith.truncf %151 : vector<16x32xf32> to vector<16x32xbf16>
      %c1_80 = arith.constant 1 : index
      %c0_81 = arith.constant 0 : index
      %c0_82 = arith.constant 0 : index
      %153 = vector.load %arg12[%c1_80, %c0_81, %c0_82] : memref<2x16x32xbf16, #tpu.memory_space<vmem>>, vector<1x16x32xbf16>
      %154 = vector.shape_cast %153 : vector<1x16x32xbf16> to vector<16x32xbf16>
      %155 = vector.shape_cast %152 : vector<16x32xbf16> to vector<1x16x32xbf16>
      tpu.vector_store %arg12[%c1_80, %c0_81, %c0_82], %155 {strides = array<i32>} : memref<2x16x32xbf16, #tpu.memory_space<vmem>>, vector<1x16x32xbf16>,
      %c1_83 = arith.constant 1 : index
      %c0_84 = arith.constant 0 : index
      %c0_85 = arith.constant 0 : index
      %156 = vector.load %arg7[%c1_83, %c0_84, %c0_85] : memref<2x32x32xbf16, #tpu.memory_space<vmem>>, vector<1x32x32xbf16>
      %157 = vector.shape_cast %156 : vector<1x32x32xbf16> to vector<32x32xbf16>
      %cst_86 = arith.constant dense<0.000000e+00> : vector<16x32xf32>
      %158 = tpu.matmul %129, %157, %cst_86 {dimension_numbers = #tpu.dot_dimension_numbers<[1], [0], [0], [1], [0, 0, 1, 1], [], []>} : vector<16x32xbf16>, vector<32x32xbf16>, vector<16x32xf32> -> vector<16x32xf32>
      %159 = arith.truncf %158 : vector<16x32xf32> to vector<16x32xbf16>
      %c1_87 = arith.constant 1 : index
      %c0_88 = arith.constant 0 : index
      %c0_89 = arith.constant 0 : index
      %160 = vector.load %arg13[%c1_87, %c0_88, %c0_89] : memref<2x16x32xbf16, #tpu.memory_space<vmem>>, vector<1x16x32xbf16>
      %161 = vector.shape_cast %160 : vector<1x16x32xbf16> to vector<16x32xbf16>
      %162 = vector.shape_cast %159 : vector<16x32xbf16> to vector<1x16x32xbf16>
      tpu.vector_store %arg13[%c1_87, %c0_88, %c0_89], %162 {strides = array<i32>} : memref<2x16x32xbf16, #tpu.memory_space<vmem>>, vector<1x16x32xbf16>,
    } else {
    }
    %c16_i32 = arith.constant 16 : i32
    %3 = arith.muli %arg0, %c16_i32 : i32
    %4 = tpu.assume_multiple %3, 16 : i32
    %5 = arith.index_cast %4 : i32 to index
    %c0 = arith.constant 0 : index
    %6 = vector.load %arg10[%5, %c0] : memref<16x32xbf16, #tpu.memory_space<vmem>>, vector<16x32xbf16>
    %7 = arith.index_cast %4 : i32 to index
    %c0_1 = arith.constant 0 : index
    %8 = vector.load %arg11[%7, %c0_1] : memref<16x32xf32, #tpu.memory_space<vmem>>, vector<16x32xf32>
    %c0_2 = arith.constant 0 : index
    %c0_3 = arith.constant 0 : index
    %9 = vector.load %arg3[%c0_2, %c0_3] : memref<16x16xf32, #tpu.memory_space<vmem>>, vector<16x16xf32>
    %c0_4 = arith.constant 0 : index
    %c0_5 = arith.constant 0 : index
    %10 = vector.load %arg4[%c0_4, %c0_5] : memref<16x16xi32, #tpu.memory_space<vmem>>, vector<16x16xi32>
    %cst = arith.constant 1.000000e+00 : f32
    %11 = vector.broadcast %cst : f32 to vector<16x16xf32>
    %12 = arith.subf %9, %11 : vector<16x16xf32>
    %cst_6 = arith.constant 1.000000e+30 : f32
    %13 = vector.broadcast %cst_6 : f32 to vector<16x16xf32>
    %14 = arith.mulf %12, %13 : vector<16x16xf32>
    %c0_i32_7 = arith.constant 0 : i32
    %15 = vector.broadcast %c0_i32_7 : i32 to vector<16x16xi32>
    %16 = arith.cmpi eq, %10, %15 : vector<16x16xi32>
    %17 = arith.extui %16 : vector<16x16xi1> to vector<16x16xi32>
    %18 = arith.sitofp %17 : vector<16x16xi32> to vector<16x16xf32>
    %c1_i32 = arith.constant 1 : i32
    %19 = vector.broadcast %c1_i32 : i32 to vector<16x16xi32>
    %20 = arith.cmpi eq, %10, %19 : vector<16x16xi32>
    %21 = arith.extui %20 : vector<16x16xi1> to vector<16x16xi32>
    %22 = arith.sitofp %21 : vector<16x16xi32> to vector<16x16xf32>
    %c0_8 = arith.constant 0 : index
    %c0_9 = arith.constant 0 : index
    %c0_10 = arith.constant 0 : index
    %23 = vector.load %arg12[%c0_8, %c0_9, %c0_10] : memref<2x16x32xbf16, #tpu.memory_space<vmem>>, vector<1x16x32xbf16>
    %24 = vector.shape_cast %23 : vector<1x16x32xbf16> to vector<16x32xbf16>
    %c1 = arith.constant 1 : index
    %c0_11 = arith.constant 0 : index
    %c0_12 = arith.constant 0 : index
    %25 = vector.load %arg12[%c1, %c0_11, %c0_12] : memref<2x16x32xbf16, #tpu.memory_space<vmem>>, vector<1x16x32xbf16>
    %26 = vector.shape_cast %25 : vector<1x16x32xbf16> to vector<16x32xbf16>
    %c0_13 = arith.constant 0 : index
    %c0_14 = arith.constant 0 : index
    %c0_15 = arith.constant 0 : index
    %27 = vector.load %arg13[%c0_13, %c0_14, %c0_15] : memref<2x16x32xbf16, #tpu.memory_space<vmem>>, vector<1x16x32xbf16>
    %28 = vector.shape_cast %27 : vector<1x16x32xbf16> to vector<16x32xbf16>
    %c1_16 = arith.constant 1 : index
    %c0_17 = arith.constant 0 : index
    %c0_18 = arith.constant 0 : index
    %29 = vector.load %arg13[%c1_16, %c0_17, %c0_18] : memref<2x16x32xbf16, #tpu.memory_space<vmem>>, vector<1x16x32xbf16>
    %30 = vector.shape_cast %29 : vector<1x16x32xbf16> to vector<16x32xbf16>
    %31 = vector.extract_strided_slice %6 {offsets = [0, 0], sizes = [16, 16], strides = [1, 1]} : vector<16x32xbf16> to vector<16x16xbf16>
    %32 = vector.extract_strided_slice %24 {offsets = [0, 0], sizes = [16, 16], strides = [1, 1]} : vector<16x32xbf16> to vector<16x16xbf16>
    %cst_19 = arith.constant dense<0.000000e+00> : vector<16x16xf32>
    %33 = tpu.matmul %32, %31, %cst_19 {dimension_numbers = #tpu.dot_dimension_numbers<[1], [1], [0], [0], [0, 0, 1, 0], [], []>} : vector<16x16xbf16>, vector<16x16xbf16>, vector<16x16xf32> -> vector<16x16xf32>
    %34 = arith.mulf %33, %18 : vector<16x16xf32>
    %35 = arith.addf %14, %34 : vector<16x16xf32>
    %36 = vector.extract_strided_slice %26 {offsets = [0, 0], sizes = [16, 16], strides = [1, 1]} : vector<16x32xbf16> to vector<16x16xbf16>
    %cst_20 = arith.constant dense<0.000000e+00> : vector<16x16xf32>
    %37 = tpu.matmul %36, %31, %cst_20 {dimension_numbers = #tpu.dot_dimension_numbers<[1], [1], [0], [0], [0, 0, 1, 0], [], []>} : vector<16x16xbf16>, vector<16x16xbf16>, vector<16x16xf32> -> vector<16x16xf32>
    %38 = arith.mulf %37, %22 : vector<16x16xf32>
    %39 = arith.addf %35, %38 : vector<16x16xf32>
    %cst_21 = arith.constant dense<0xFF800000> : vector<16xf32>
    %40 = vector.multi_reduction <maximumf>, %39, %cst_21 [0] : vector<16x16xf32> to vector<16xf32>
    %41 = vector.shape_cast %40 : vector<16xf32> to vector<1x16xf32>
    %42 = vector.broadcast %41 : vector<1x16xf32> to vector<16x16xf32>
    %43 = arith.subf %39, %42 : vector<16x16xf32>
    %44 = math.exp %43 : vector<16x16xf32>
    %45 = arith.mulf %44, %9 : vector<16x16xf32>
    %cst_22 = arith.constant dense<0.000000e+00> : vector<16xf32>
    %46 = vector.multi_reduction <add>, %45, %cst_22 [0] : vector<16x16xf32> to vector<16xf32>
    %47 = vector.shape_cast %46 : vector<16xf32> to vector<1x16xf32>
    %cst_23 = arith.constant 1.000000e-30 : f32
    %48 = vector.broadcast %cst_23 : f32 to vector<1x16xf32>
    %49 = arith.maximumf %47, %48 : vector<1x16xf32>
    %50 = tpu.reciprocal %49 {approx = true} : vector<1x16xf32> -> vector<1x16xf32>
    %51 = vector.broadcast %50 : vector<1x16xf32> to vector<16x16xf32>
    %52 = arith.mulf %45, %51 : vector<16x16xf32>
    %cst_24 = arith.constant 0.000000e+00 : f32
    %53 = vector.broadcast %cst_24 : f32 to vector<16x16xf32>
    %54 = arith.mulf %52, %18 : vector<16x16xf32>
    %55 = arith.truncf %54 : vector<16x16xf32> to vector<16x16xbf16>
    %56 = vector.extract_strided_slice %28 {offsets = [0, 0], sizes = [16, 16], strides = [1, 1]} : vector<16x32xbf16> to vector<16x16xbf16>
    %cst_25 = arith.constant dense<0.000000e+00> : vector<16x16xf32>
    %57 = tpu.matmul %55, %56, %cst_25 {dimension_numbers = #tpu.dot_dimension_numbers<[0], [0], [1], [1], [0, 1, 1, 1], [], []>} : vector<16x16xbf16>, vector<16x16xbf16>, vector<16x16xf32> -> vector<16x16xf32>
    %58 = arith.addf %53, %57 : vector<16x16xf32>
    %59 = arith.mulf %52, %22 : vector<16x16xf32>
    %60 = arith.truncf %59 : vector<16x16xf32> to vector<16x16xbf16>
    %61 = vector.extract_strided_slice %30 {offsets = [0, 0], sizes = [16, 16], strides = [1, 1]} : vector<16x32xbf16> to vector<16x16xbf16>
    %cst_26 = arith.constant dense<0.000000e+00> : vector<16x16xf32>
    %62 = tpu.matmul %60, %61, %cst_26 {dimension_numbers = #tpu.dot_dimension_numbers<[0], [0], [1], [1], [0, 1, 1, 1], [], []>} : vector<16x16xbf16>, vector<16x16xbf16>, vector<16x16xf32> -> vector<16x16xf32>
    %63 = arith.addf %58, %62 : vector<16x16xf32>
    %c0_27 = arith.constant 0 : index
    %c0_28 = arith.constant 0 : index
    %64 = vector.load %arg14[%c0_27, %c0_28] : memref<16x32xf32, #tpu.memory_space<vmem>>, vector<16x16xf32>
    tpu.vector_store %arg14[%c0_27, %c0_28], %63 {strides = array<i32>} : memref<16x32xf32, #tpu.memory_space<vmem>>, vector<16x16xf32>,
    %65 = vector.extract_strided_slice %6 {offsets = [0, 16], sizes = [16, 16], strides = [1, 1]} : vector<16x32xbf16> to vector<16x16xbf16>
    %66 = vector.extract_strided_slice %24 {offsets = [0, 16], sizes = [16, 16], strides = [1, 1]} : vector<16x32xbf16> to vector<16x16xbf16>
    %cst_29 = arith.constant dense<0.000000e+00> : vector<16x16xf32>
    %67 = tpu.matmul %66, %65, %cst_29 {dimension_numbers = #tpu.dot_dimension_numbers<[1], [1], [0], [0], [0, 0, 1, 0], [], []>} : vector<16x16xbf16>, vector<16x16xbf16>, vector<16x16xf32> -> vector<16x16xf32>
    %68 = arith.mulf %67, %18 : vector<16x16xf32>
    %69 = arith.addf %14, %68 : vector<16x16xf32>
    %70 = vector.extract_strided_slice %26 {offsets = [0, 16], sizes = [16, 16], strides = [1, 1]} : vector<16x32xbf16> to vector<16x16xbf16>
    %cst_30 = arith.constant dense<0.000000e+00> : vector<16x16xf32>
    %71 = tpu.matmul %70, %65, %cst_30 {dimension_numbers = #tpu.dot_dimension_numbers<[1], [1], [0], [0], [0, 0, 1, 0], [], []>} : vector<16x16xbf16>, vector<16x16xbf16>, vector<16x16xf32> -> vector<16x16xf32>
    %72 = arith.mulf %71, %22 : vector<16x16xf32>
    %73 = arith.addf %69, %72 : vector<16x16xf32>
    %cst_31 = arith.constant dense<0xFF800000> : vector<16xf32>
    %74 = vector.multi_reduction <maximumf>, %73, %cst_31 [0] : vector<16x16xf32> to vector<16xf32>
    %75 = vector.shape_cast %74 : vector<16xf32> to vector<1x16xf32>
    %76 = vector.broadcast %75 : vector<1x16xf32> to vector<16x16xf32>
    %77 = arith.subf %73, %76 : vector<16x16xf32>
    %78 = math.exp %77 : vector<16x16xf32>
    %79 = arith.mulf %78, %9 : vector<16x16xf32>
    %cst_32 = arith.constant dense<0.000000e+00> : vector<16xf32>
    %80 = vector.multi_reduction <add>, %79, %cst_32 [0] : vector<16x16xf32> to vector<16xf32>
    %81 = vector.shape_cast %80 : vector<16xf32> to vector<1x16xf32>
    %cst_33 = arith.constant 1.000000e-30 : f32
    %82 = vector.broadcast %cst_33 : f32 to vector<1x16xf32>
    %83 = arith.maximumf %81, %82 : vector<1x16xf32>
    %84 = tpu.reciprocal %83 {approx = true} : vector<1x16xf32> -> vector<1x16xf32>
    %85 = vector.broadcast %84 : vector<1x16xf32> to vector<16x16xf32>
    %86 = arith.mulf %79, %85 : vector<16x16xf32>
    %cst_34 = arith.constant 0.000000e+00 : f32
    %87 = vector.broadcast %cst_34 : f32 to vector<16x16xf32>
    %88 = arith.mulf %86, %18 : vector<16x16xf32>
    %89 = arith.truncf %88 : vector<16x16xf32> to vector<16x16xbf16>
    %90 = vector.extract_strided_slice %28 {offsets = [0, 16], sizes = [16, 16], strides = [1, 1]} : vector<16x32xbf16> to vector<16x16xbf16>
    %cst_35 = arith.constant dense<0.000000e+00> : vector<16x16xf32>
    %91 = tpu.matmul %89, %90, %cst_35 {dimension_numbers = #tpu.dot_dimension_numbers<[0], [0], [1], [1], [0, 1, 1, 1], [], []>} : vector<16x16xbf16>, vector<16x16xbf16>, vector<16x16xf32> -> vector<16x16xf32>
    %92 = arith.addf %87, %91 : vector<16x16xf32>
    %93 = arith.mulf %86, %22 : vector<16x16xf32>
    %94 = arith.truncf %93 : vector<16x16xf32> to vector<16x16xbf16>
    %95 = vector.extract_strided_slice %30 {offsets = [0, 16], sizes = [16, 16], strides = [1, 1]} : vector<16x32xbf16> to vector<16x16xbf16>
    %cst_36 = arith.constant dense<0.000000e+00> : vector<16x16xf32>
    %96 = tpu.matmul %94, %95, %cst_36 {dimension_numbers = #tpu.dot_dimension_numbers<[0], [0], [1], [1], [0, 1, 1, 1], [], []>} : vector<16x16xbf16>, vector<16x16xbf16>, vector<16x16xf32> -> vector<16x16xf32>
    %97 = arith.addf %92, %96 : vector<16x16xf32>
    %c0_37 = arith.constant 0 : index
    %c16 = arith.constant 16 : index
    %98 = vector.load %arg14[%c0_37, %c16] : memref<16x32xf32, #tpu.memory_space<vmem>>, vector<16x16xf32>
    tpu.vector_store %arg14[%c0_37, %c16], %97 {strides = array<i32>} : memref<16x32xf32, #tpu.memory_space<vmem>>, vector<16x16xf32>,
    %c0_38 = arith.constant 0 : index
    %c0_39 = arith.constant 0 : index
    %99 = vector.load %arg14[%c0_38, %c0_39] : memref<16x32xf32, #tpu.memory_space<vmem>>, vector<16x32xf32>
    %100 = arith.addf %99, %8 : vector<16x32xf32>
    %cst_40 = arith.constant 0.000000e+00 : f32
    %101 = vector.broadcast %cst_40 : f32 to vector<16x32xf32>
    %102 = arith.maximumf %100, %101 : vector<16x32xf32>
    %c0_41 = arith.constant 0 : index
    %c0_42 = arith.constant 0 : index
    %103 = vector.load %arg9[%c0_41, %c0_42] : memref<16x32xf32, #tpu.memory_space<vmem>>, vector<16x32xf32>
    tpu.vector_store %arg9[%c0_41, %c0_42], %102 {strides = array<i32>} : memref<16x32xf32, #tpu.memory_space<vmem>>, vector<16x32xf32>,
    return
  }
  func.func @transform_0(%arg0: i32) -> (i32, i32) {
    %c0_i32 = arith.constant 0 : i32
    %c0_i32_0 = arith.constant 0 : i32
    %c0_i32_1 = arith.constant 0 : i32
    return %c0_i32, %c0_i32_0 : i32, i32
  }
  func.func @transform_1(%arg0: i32) -> (i32, i32) {
    %c0_i32 = arith.constant 0 : i32
    %c0_i32_0 = arith.constant 0 : i32
    %c0_i32_1 = arith.constant 0 : i32
    return %c0_i32, %c0_i32_0 : i32, i32
  }
  func.func @transform_2(%arg0: i32) -> (i32, i32) {
    %c0_i32 = arith.constant 0 : i32
    %c0_i32_0 = arith.constant 0 : i32
    return %c0_i32, %arg0 : i32, i32
  }
  func.func @transform_3(%arg0: i32) -> (i32, i32) {
    %c0_i32 = arith.constant 0 : i32
    %c0_i32_0 = arith.constant 0 : i32
    return %c0_i32, %arg0 : i32, i32
  }
  func.func @transform_4(%arg0: i32) -> (i32, i32, i32) {
    %c0_i32 = arith.constant 0 : i32
    %c0_i32_0 = arith.constant 0 : i32
    %c0_i32_1 = arith.constant 0 : i32
    %c0_i32_2 = arith.constant 0 : i32
    return %c0_i32, %c0_i32_0, %c0_i32_1 : i32, i32, i32
  }
  func.func @transform_5(%arg0: i32) -> (i32, i32, i32) {
    %c0_i32 = arith.constant 0 : i32
    %c0_i32_0 = arith.constant 0 : i32
    %c0_i32_1 = arith.constant 0 : i32
    %c0_i32_2 = arith.constant 0 : i32
    return %c0_i32, %c0_i32_0, %c0_i32_1 : i32, i32, i32
  }
  func.func @transform_6(%arg0: i32) -> (i32, i32, i32) {
    %c0_i32 = arith.constant 0 : i32
    %c0_i32_0 = arith.constant 0 : i32
    %c0_i32_1 = arith.constant 0 : i32
    %c0_i32_2 = arith.constant 0 : i32
    return %c0_i32, %c0_i32_0, %c0_i32_1 : i32, i32, i32
  }
  func.func @transform_7(%arg0: i32) -> (i32, i32) {
    %c0_i32 = arith.constant 0 : i32
    %c0_i32_0 = arith.constant 0 : i32
    %c0_i32_1 = arith.constant 0 : i32
    return %c0_i32, %c0_i32_0 : i32, i32
  }
  func.func @transform_8(%arg0: i32) -> (i32, i32) {
    %c0_i32 = arith.constant 0 : i32
    %c0_i32_0 = arith.constant 0 : i32
    return %arg0, %c0_i32 : i32, i32
  }
}

</mosaic_0001>

<llo_original>
// kernel: tpu_custom_call.1
$region0: #{tpu_custom_call.1}
  #allocation0 [shape = 'u32[]', space=smem, size = 0x4, offset = 0x4, fixed_abs, tag = 'smem constant byte address 0x4 - core index']
  #allocation1 [shape = 'u32[144,128]{1,0:T(1,128)}', space=vmem, size = 0x12000, scoped, tag = 'internal scratch']
  #allocation2 [shape = 'bf16[16,32]{1,0:T(8,128)(2,1)}', space=vmem, size = 0x1000, scoped, tag = 'scratch operand']
  #allocation3 [shape = 'f32[16,32]{1,0:T(8,128)}', space=vmem, size = 0x2000, scoped, tag = 'scratch operand']
  #allocation4 [shape = 'bf16[2,16,32]{2,1,0:T(8,128)(2,1)}', space=vmem, size = 0x2000, scoped, tag = 'scratch operand']
  #allocation5 [shape = 'bf16[2,16,32]{2,1,0:T(8,128)(2,1)}', space=vmem, size = 0x2000, scoped, tag = 'scratch operand']
  #allocation6 [shape = 'f32[16,32]{1,0:T(8,128)}', space=vmem, size = 0x2000, scoped, tag = 'scratch operand']
  %s0 = inlined_call_operand.hbm [shape: bf16[16,32], index: 0, kind: input, shape index: {}]
  %s1 = inlined_call_operand.vmem [shape: f32[16,2], index: 1, kind: input, shape index: {}]
  %s2 = inlined_call_operand.vmem [shape: f32[16,16], index: 2, kind: input, shape index: {}]
  %s3 = inlined_call_operand.hbm [shape: s32[16,16], index: 3, kind: input, shape index: {}]
  %s4 = inlined_call_operand.hbm [shape: bf16[2,32,128], index: 4, kind: input, shape index: {}]
  %s5 = inlined_call_operand.hbm [shape: bf16[2,32,32], index: 5, kind: input, shape index: {}]
  %s6 = inlined_call_operand.hbm [shape: bf16[2,32,32], index: 6, kind: input, shape index: {}]
  %s7 = inlined_call_operand.vmem [shape: f32[1,32], index: 7, kind: input, shape index: {}]
  %s8 = inlined_call_operand.hbm [shape: f32[16,32], index: 8, kind: output, shape index: {}]
  %s9 = sld [smem:[#allocation0]]
  $region66: #{tpu_custom_call.1} parent=0
    _
  %s11 = ssub.s32 1, %s9
  %s12 = scalar_select 0, %s11, %s9
  $region1: #{tpu_custom_call.1} parent=0
    #allocation7 [shape = 'u8[4096]{0}', space=vmem, size = 0x1000, scoped, tag = 'input window, operand 0, single buffered']
    #allocation8 [shape = 's32[1]{0}', space=sflag, size = 0x4, scoped, tag = 'scoped memory for tpu_custom_call.1']
    #allocation9 [shape = 's32[1]{0}', space=sflag, size = 0x4, scoped, tag = 'scoped memory for tpu_custom_call.1']
    #allocation10 [shape = 'u8[8192]{0}', space=vmem, size = 0x2000, scoped, tag = 'input window, operand 3, single buffered']
    #allocation11 [shape = 's32[1]{0}', space=sflag, size = 0x4, scoped, tag = 'scoped memory for tpu_custom_call.1']
    #allocation12 [shape = 'u8[16384]{0}', space=vmem, size = 0x4000, scoped, tag = 'input window, operand 4, single buffered']
    #allocation13 [shape = 'u8[16384]{0}', space=vmem, size = 0x4000, scoped, tag = 'input window, operand 5, single buffered']
    #allocation14 [shape = 's32[1]{0}', space=sflag, size = 0x4, scoped, tag = 'scoped memory for tpu_custom_call.1']
    #allocation15 [shape = 'u8[16384]{0}', space=vmem, size = 0x4000, scoped, tag = 'input window, operand 6, single buffered']
    #allocation16 [shape = 'u8[8192]{0}', space=vmem, size = 0x2000, scoped, tag = 'output window, operand 0, single buffered']
    %13 = vsyncpa [#allocation8], 0
    %14 = vsyncpa [#allocation11], 0
    %15 = vsyncpa [#allocation14], 0
    %16 = vsyncpa [#allocation9], 0
    // Predicated region
    $region2: #{tpu_custom_call.1} parent=1 // pred_check
      _
    $region3: #{tpu_custom_call.1} parent=1 // pred_check_branch
      %18 = sbr.rel (0) target = $region5
    $region4: #{tpu_custom_call.1} parent=1 // pred_region
      %s20 = ssub.s32 128, 128
      %21 = vsyncadd [#allocation8], %s20
      %s22 = sshll.u32 [#allocation7], 4
      %s23 = int_to_ptr.vmem [resolvable:$true] %s22
      %28 = dma.hbm_to_vmem [thread:$0]  %s0, 128, %s23, [#allocation8], 64, 64, 4
    $region5: #{tpu_custom_call.1} parent=1 // pred_fallthru
      _
    // Predicated region
    $region6: #{tpu_custom_call.1} parent=1 // pred_check
      _
    $region7: #{tpu_custom_call.1} parent=1 // pred_check_branch
      %30 = sbr.rel (0) target = $region9
    $region8: #{tpu_custom_call.1} parent=1 // pred_region
      _
    $region9: #{tpu_custom_call.1} parent=1 // pred_fallthru
      _
    // Predicated region
    $region10: #{tpu_custom_call.1} parent=1 // pred_check
      _
    $region11: #{tpu_custom_call.1} parent=1 // pred_check_branch
      %32 = sbr.rel (0) target = $region13
    $region12: #{tpu_custom_call.1} parent=1 // pred_region
      _
    $region13: #{tpu_custom_call.1} parent=1 // pred_fallthru
      _
    // Predicated region
    $region14: #{tpu_custom_call.1} parent=1 // pred_check
      _
    $region15: #{tpu_custom_call.1} parent=1 // pred_check_branch
      %34 = sbr.rel (0) target = $region17
    $region16: #{tpu_custom_call.1} parent=1 // pred_region
      %s36 = ssub.s32 256, 256
      %37 = vsyncadd [#allocation11], %s36
      %s38 = sshll.u32 [#allocation10], 4
      %s39 = int_to_ptr.vmem [resolvable:$true] %s38
      %44 = dma.hbm_to_vmem [thread:$0]  %s3, 256, %s39, [#allocation11], 128, 128, 8
    $region17: #{tpu_custom_call.1} parent=1 // pred_fallthru
      _
    // Predicated region
    $region18: #{tpu_custom_call.1} parent=1 // pred_check
      _
    $region19: #{tpu_custom_call.1} parent=1 // pred_check_branch
      %46 = sbr.rel (0) target = $region21
    $region20: #{tpu_custom_call.1} parent=1 // pred_region
      %s48 = ssub.s32 512, 512
      %49 = vsyncadd [#allocation11], %s48
      %s50 = sshll.u32 [#allocation12], 4
      %s51 = int_to_ptr.vmem [resolvable:$true] %s50
      %56 = dma.hbm_to_vmem [thread:$0]  %s4, 512, %s51, [#allocation11], 64, 64, 4
    $region21: #{tpu_custom_call.1} parent=1 // pred_fallthru
      _
    // Predicated region
    $region22: #{tpu_custom_call.1} parent=1 // pred_check
      _
    $region23: #{tpu_custom_call.1} parent=1 // pred_check_branch
      %58 = sbr.rel (0) target = $region25
    $region24: #{tpu_custom_call.1} parent=1 // pred_region
      %s60 = ssub.s32 512, 512
      %61 = vsyncadd [#allocation14], %s60
      %s62 = sshll.u32 [#allocation13], 4
      %s63 = int_to_ptr.vmem [resolvable:$true] %s62
      %68 = dma.hbm_to_vmem [thread:$0]  %s5, 512, %s63, [#allocation14], 64, 64, 4
    $region25: #{tpu_custom_call.1} parent=1 // pred_fallthru
      _
    // Predicated region
    $region26: #{tpu_custom_call.1} parent=1 // pred_check
      _
    $region27: #{tpu_custom_call.1} parent=1 // pred_check_branch
      %70 = sbr.rel (0) target = $region29
    $region28: #{tpu_custom_call.1} parent=1 // pred_region
      %s72 = ssub.s32 512, 512
      %73 = vsyncadd [#allocation14], %s72
      %s74 = sshll.u32 [#allocation15], 4
      %s75 = int_to_ptr.vmem [resolvable:$true] %s74
      %80 = dma.hbm_to_vmem [thread:$0]  %s6, 512, %s75, [#allocation14], 64, 64, 4
    $region29: #{tpu_custom_call.1} parent=1 // pred_fallthru
      _
    // Predicated region
    $region30: #{tpu_custom_call.1} parent=1 // pred_check
      _
    $region31: #{tpu_custom_call.1} parent=1 // pred_check_branch
      %82 = sbr.rel (0) target = $region33
    $region32: #{tpu_custom_call.1} parent=1 // pred_region
      _
    $region33: #{tpu_custom_call.1} parent=1 // pred_fallthru
      _
    // Predicated region
    $region34: #{tpu_custom_call.1} parent=1 // pred_check
      _
    $region35: #{tpu_custom_call.1} parent=1 // pred_check_branch
      %84 = sbr.rel (0) target = $region37
    $region36: #{tpu_custom_call.1} parent=1 // pred_region
      %85 = dma.done [#allocation8], 128
    $region37: #{tpu_custom_call.1} parent=1 // pred_fallthru
      _
    // Predicated region
    $region38: #{tpu_custom_call.1} parent=1 // pred_check
      _
    $region39: #{tpu_custom_call.1} parent=1 // pred_check_branch
      %87 = sbr.rel (0) target = $region41
    $region40: #{tpu_custom_call.1} parent=1 // pred_region
      %88 = dma.done [#allocation11], 256
    $region41: #{tpu_custom_call.1} parent=1 // pred_fallthru
      _
    // Predicated region
    $region42: #{tpu_custom_call.1} parent=1 // pred_check
      _
    $region43: #{tpu_custom_call.1} parent=1 // pred_check_branch
      %90 = sbr.rel (0) target = $region45
    $region44: #{tpu_custom_call.1} parent=1 // pred_region
      %91 = dma.done [#allocation11], 512
    $region45: #{tpu_custom_call.1} parent=1 // pred_fallthru
      _
    // Predicated region
    $region46: #{tpu_custom_call.1} parent=1 // pred_check
      _
    $region47: #{tpu_custom_call.1} parent=1 // pred_check_branch
      %93 = sbr.rel (0) target = $region49
    $region48: #{tpu_custom_call.1} parent=1 // pred_region
      %94 = dma.done [#allocation14], 512
    $region49: #{tpu_custom_call.1} parent=1 // pred_fallthru
      _
    // Predicated region
    $region50: #{tpu_custom_call.1} parent=1 // pred_check
      _
    $region51: #{tpu_custom_call.1} parent=1 // pred_check_branch
      %96 = sbr.rel (0) target = $region53
    $region52: #{tpu_custom_call.1} parent=1 // pred_region
      %97 = dma.done [#allocation14], 512
    $region53: #{tpu_custom_call.1} parent=1 // pred_fallthru
      _
    %p99 = scmp.eq.s32.totalorder 0, 0
    // Predicated region
    $region54: #{tpu_custom_call.1} parent=1 // pred_check
      %p100 = pneg %p99
    $region55: #{tpu_custom_call.1} parent=1 // pred_check_branch
      %102 = sbr.rel (%p100) target = $region57
    $region56: #{tpu_custom_call.1} parent=1 // pred_region
      %v103 = vld [vmem:[#allocation7] sm:$0xf]
      %v104 = vld [vmem:[#allocation7 + $0x4] sm:$0xf]
      %v105 = vld [vmem:[%s1] sm:$0xff]
      %v106 = vld [vmem:[%s1 + $0x8] sm:$0xff]
      %v107 = vpack.c.bf16 %v106, %v105
      %109 = vset.pattern.permute.xlu0 0
      %110 = vperm.xlu0 %109, %v107
      %v111 = vpop.permute.xlu0 %110
      %v114 = vunpack.c.l.s4 839922192
      %v115 = vunpack.c.0.s8 %v114
      %v116 = vlaneseq
      %v117 = vshrl.u32 %v116, 7
      %v118 = vsub.s32 %v115, %v117
      %v119 = vrot.slane %v111, %v118
      %v121 = vunpack.c.l.s4 1985246804
      %v122 = vunpack.c.0.s8 %v121
      %v123 = vlaneseq
      %v124 = vshrl.u32 %v123, 7
      %v125 = vsub.s32 %v122, %v124
      %v126 = vrot.slane %v111, %v125
      %v129 = vmul.bf16 %v103, %v119
      %v130 = vmul.bf16 %v104, %v126
      %v131 = vld [vmem:[#allocation12] sm:$0xf]
      %v132 = vld [vmem:[#allocation12 + $0x4] sm:$0xf]
      %v133 = vld [vmem:[#allocation12 + $0x8] sm:$0xf]
      %v134 = vld [vmem:[#allocation12 + $0xc] sm:$0xf]
      %135 = vset.pattern.permute.xlu0 1
      %136 = vperm.xlu0 %135, %v107
      %v137 = vpop.permute.xlu0 %136
      %v140 = vunpack.c.l.s4 839922192
      %v141 = vunpack.c.0.s8 %v140
      %v142 = vlaneseq
      %v143 = vshrl.u32 %v142, 7
      %v144 = vsub.s32 %v141, %v143
      %v145 = vrot.slane %v137, %v144
      %v147 = vunpack.c.l.s4 1985246804
      %v148 = vunpack.c.0.s8 %v147
      %v149 = vlaneseq
      %v150 = vshrl.u32 %v149, 7
      %v151 = vsub.s32 %v148, %v150
      %v152 = vrot.slane %v137, %v151
      %v155 = vmul.bf16 %v103, %v145
      %v156 = vmul.bf16 %v104, %v152
      %s157 = scalar_lea.vmem [#allocation12], 16
      %v158 = vld [vmem:[%s157] sm:$0xf]
      %v159 = vld [vmem:[%s157 + $0x4] sm:$0xf]
      %v160 = vld [vmem:[%s157 + $0x8] sm:$0xf]
      %v161 = vld [vmem:[%s157 + $0xc] sm:$0xf]
      %v164 = vunpack.c.l.b16 %v155
      %v165 = vunpack.c.l.b16 %v156
      %v166 = vpack.c.b16 %v165, %v164
      %v171 = vunpack.c.l.b16 %v158
      %v172 = vunpack.c.l.b16 %v159
      %v173 = vunpack.c.l.b16 %v160
      %v174 = vunpack.c.l.b16 %v161
      %v175 = vpack.c.b16 %v172, %v171
      %v176 = vpack.c.b16 %v174, %v173
      %vm179 = vcmask 261120
      %v181 = vsel %vm179, %v166, 0
      %183 = vmatprep.subr.bf16.mxu0 0
      %184 = vmatpush1.bf16.msra.mxu0 0
      %185 = vmatprep.subr.bf16.mxu0 0
      %186 = vmatpush1.bf16.msra.mxu0 0
      %187 = vmatprep.subr.bf16.mxu0 0
      %188 = vmatpush1.bf16.msra.mxu0 0
      %189 = vmatprep.subr.bf16.mxu0 0
      %190 = vmatpush1.bf16.msra.mxu0 0
      %191 = vmatprep.subr.bf16.mxu0 0
      %192 = vmatpush1.bf16.msra.mxu0 0
      %193 = vmatprep.subr.bf16.mxu0 0
      %194 = vmatpush1.bf16.msra.mxu0 0
      %195 = vmatprep.subr.bf16.mxu0 0
      %196 = vmatpush1.bf16.msra.mxu0 %v176
      %197 = vmatprep.subr.bf16.mxu0 0
      %198 = vmatpush1.bf16.msra.mxu0 %v175
      %199 = vmatprep.subr.bf16.mxu0 0
      %200 = vmatpush2.bf16.msra.mxu0 0
      %201 = vmatprep.subr.bf16.mxu0 0
      %202 = vmatpush2.bf16.msra.mxu0 0
      %203 = vmatprep.subr.bf16.mxu0 0
      %204 = vmatpush2.bf16.msra.mxu0 0
      %205 = vmatprep.subr.bf16.mxu0 0
      %206 = vmatpush2.bf16.msra.mxu0 0
      %207 = vmatprep.subr.bf16.mxu0 0
      %208 = vmatpush2.bf16.msra.mxu0 0
      %209 = vmatprep.subr.bf16.mxu0 0
      %210 = vmatpush2.bf16.msra.mxu0 0
      %211 = vmatprep.subr.bf16.mxu0 0
      %212 = vmatpush2.bf16.msra.mxu0 0
      %213 = vmatprep.subr.bf16.mxu0 0
      %214 = vmatpush2.bf16.msra.mxu0 0
      %215 = vmatprep.mubr.bf16.mxu0 0
      %216 = vmatmul.mubr.bf16.gmra.mxu0 %v181
      %v217 = vpop.f32.mrf.mxu0
      %v218 = vadd.f32 0.0, %v217
      %v219 = vpop.f32.mrf.mxu0
      %v220 = vpop.f32.mrf.mxu0
      %v221 = vadd.f32 0.0, %v220
      %v222 = vpop.f32.mrf.mxu0
      %223 = vdwg.mxu0
      %v226 = vunpack.c.l.b16 %v129
      %v227 = vunpack.c.l.b16 %v130
      %v228 = vpack.c.b16 %v227, %v226
      %v233 = vunpack.c.l.b16 %v131
      %v234 = vunpack.c.l.b16 %v132
      %v235 = vunpack.c.l.b16 %v133
      %v236 = vunpack.c.l.b16 %v134
      %v237 = vpack.c.b16 %v234, %v233
      %v238 = vpack.c.b16 %v236, %v235
      %v242 = vsel %vm179, %v228, 0
      %244 = vmatprep.subr.bf16.mxu0 0
      %245 = vmatpush1.bf16.msra.mxu0 0
      %246 = vmatprep.subr.bf16.mxu0 0
      %247 = vmatpush1.bf16.msra.mxu0 0
      %248 = vmatprep.subr.bf16.mxu0 0
      %249 = vmatpush1.bf16.msra.mxu0 0
      %250 = vmatprep.subr.bf16.mxu0 0
      %251 = vmatpush1.bf16.msra.mxu0 0
      %252 = vmatprep.subr.bf16.mxu0 0
      %253 = vmatpush1.bf16.msra.mxu0 0
      %254 = vmatprep.subr.bf16.mxu0 0
      %255 = vmatpush1.bf16.msra.mxu0 0
      %256 = vmatprep.subr.bf16.mxu0 0
      %257 = vmatpush1.bf16.msra.mxu0 %v238
      %258 = vmatprep.subr.bf16.mxu0 0
      %259 = vmatpush1.bf16.msra.mxu0 %v237
      %260 = vmatprep.subr.bf16.mxu0 0
      %261 = vmatpush2.bf16.msra.mxu0 0
      %262 = vmatprep.subr.bf16.mxu0 0
      %263 = vmatpush2.bf16.msra.mxu0 0
      %264 = vmatprep.subr.bf16.mxu0 0
      %265 = vmatpush2.bf16.msra.mxu0 0
      %266 = vmatprep.subr.bf16.mxu0 0
      %267 = vmatpush2.bf16.msra.mxu0 0
      %268 = vmatprep.subr.bf16.mxu0 0
      %269 = vmatpush2.bf16.msra.mxu0 0
      %270 = vmatprep.subr.bf16.mxu0 0
      %271 = vmatpush2.bf16.msra.mxu0 0
      %272 = vmatprep.subr.bf16.mxu0 0
      %273 = vmatpush2.bf16.msra.mxu0 0
      %274 = vmatprep.subr.bf16.mxu0 0
      %275 = vmatpush2.bf16.msra.mxu0 0
      %276 = vmatprep.mubr.bf16.mxu0 0
      %277 = vmatmul.mubr.bf16.gmra.mxu0 %v242
      %v278 = vpop.f32.mrf.mxu0
      %v279 = vadd.f32 %v218, %v278
      %v280 = vpop.f32.mrf.mxu0
      %v281 = vpop.f32.mrf.mxu0
      %v282 = vadd.f32 %v221, %v281
      %v283 = vpop.f32.mrf.mxu0
      %284 = vdwg.mxu0
      %v285 = vpack.c.bf16 %v282, %v279
      %v287 = vunpack.c.l.b16 %v285
      %v288 = vunpack.c.h.b16 %v285
      %v289 = vpack.c.b16 %v287, %v287
      %v290 = vpack.c.b16 %v288, %v288
      %291 = vrot.lane.b32.xlu0 %v289, 96
      %v292 = vpop.permute.xlu0 %291
      %293 = vrot.lane.b32.xlu0 %v290, 96
      %v294 = vpop.permute.xlu0 %293
      %vm297 = vcmask 257024
      %298 = vst.msk [vmem:[#allocation2] sm:$0xf] %vm297, %v292
      %299 = vst.msk [vmem:[#allocation2 + $0x4] sm:$0xf] %vm297, %v294
      %v300 = vld [vmem:[%s7] sm:$0x1]
      %v302 = vlaneseq
      %v303 = vshrl.u32 %v302, 7
      %v304 = vsub.s32 0, %v303
      %v305 = vrot.slane %v300, %v304
      %306 = vrot.lane.b32.xlu0 %v305, 96
      %v307 = vpop.permute.xlu0 %306
      %v309 = vadd.f32 %v279, %v307
      %v310 = vadd.f32 %v282, %v307
      %313 = vrot.lane.b32.xlu0 %v309, 32
      %v314 = vpop.permute.xlu0 %313
      %315 = vrot.lane.b32.xlu0 %v310, 32
      %v316 = vpop.permute.xlu0 %315
      %319 = vst.msk [vmem:[#allocation3] sm:$0xff] %vm179, %v314
      %320 = vst.msk [vmem:[#allocation3 + $0x8] sm:$0xff] %vm179, %v316
      %v321 = vld [vmem:[#allocation13] sm:$0xf]
      %v322 = vld [vmem:[#allocation13 + $0x4] sm:$0xf]
      %v323 = vld [vmem:[#allocation13 + $0x8] sm:$0xf]
      %v324 = vld [vmem:[#allocation13 + $0xc] sm:$0xf]
      %v329 = vunpack.c.l.b16 %v321
      %v330 = vunpack.c.l.b16 %v322
      %v331 = vunpack.c.l.b16 %v323
      %v332 = vunpack.c.l.b16 %v324
      %v333 = vpack.c.b16 %v330, %v329
      %v334 = vpack.c.b16 %v332, %v331
      %v338 = vsel %vm179, %v285, 0
      %340 = vmatprep.subr.bf16.mxu0 0
      %341 = vmatpush1.bf16.msra.mxu0 0
      %342 = vmatprep.subr.bf16.mxu0 0
      %343 = vmatpush1.bf16.msra.mxu0 0
      %344 = vmatprep.subr.bf16.mxu0 0
      %345 = vmatpush1.bf16.msra.mxu0 0
      %346 = vmatprep.subr.bf16.mxu0 0
      %347 = vmatpush1.bf16.msra.mxu0 0
      %348 = vmatprep.subr.bf16.mxu0 0
      %349 = vmatpush1.bf16.msra.mxu0 0
      %350 = vmatprep.subr.bf16.mxu0 0
      %351 = vmatpush1.bf16.msra.mxu0 0
      %352 = vmatprep.subr.bf16.mxu0 0
      %353 = vmatpush1.bf16.msra.mxu0 %v334
      %354 = vmatprep.subr.bf16.mxu0 0
      %355 = vmatpush1.bf16.msra.mxu0 %v333
      %356 = vmatprep.subr.bf16.mxu0 0
      %357 = vmatpush2.bf16.msra.mxu0 0
      %358 = vmatprep.subr.bf16.mxu0 0
      %359 = vmatpush2.bf16.msra.mxu0 0
      %360 = vmatprep.subr.bf16.mxu0 0
      %361 = vmatpush2.bf16.msra.mxu0 0
      %362 = vmatprep.subr.bf16.mxu0 0
      %363 = vmatpush2.bf16.msra.mxu0 0
      %364 = vmatprep.subr.bf16.mxu0 0
      %365 = vmatpush2.bf16.msra.mxu0 0
      %366 = vmatprep.subr.bf16.mxu0 0
      %367 = vmatpush2.bf16.msra.mxu0 0
      %368 = vmatprep.subr.bf16.mxu0 0
      %369 = vmatpush2.bf16.msra.mxu0 0
      %370 = vmatprep.subr.bf16.mxu0 0
      %371 = vmatpush2.bf16.msra.mxu0 0
      %372 = vmatprep.mubr.bf16.mxu0 0
      %373 = vmatmul.mubr.bf16.gmra.mxu0 %v338
      %v374 = vpop.f32.mrf.mxu0
      %v375 = vadd.f32 0.0, %v374
      %v376 = vpop.f32.mrf.mxu0
      %v377 = vpop.f32.mrf.mxu0
      %v378 = vadd.f32 0.0, %v377
      %v379 = vpop.f32.mrf.mxu0
      %380 = vdwg.mxu0
      %v381 = vpack.c.bf16 %v378, %v375
      %v383 = vunpack.c.l.b16 %v381
      %v384 = vunpack.c.h.b16 %v381
      %v385 = vpack.c.b16 %v383, %v383
      %v386 = vpack.c.b16 %v384, %v384
      %389 = vst.msk [vmem:[#allocation4] sm:$0xf] %vm297, %v385
      %390 = vst.msk [vmem:[#allocation4 + $0x4] sm:$0xf] %vm297, %v386
      %v391 = vld [vmem:[#allocation15] sm:$0xf]
      %v392 = vld [vmem:[#allocation15 + $0x4] sm:$0xf]
      %v393 = vld [vmem:[#allocation15 + $0x8] sm:$0xf]
      %v394 = vld [vmem:[#allocation15 + $0xc] sm:$0xf]
      %395 = vrot.lane.b32.xlu0 %v285, 64
      %v396 = vpop.permute.xlu0 %395
      %v401 = vunpack.c.l.b16 %v391
      %v402 = vunpack.c.l.b16 %v392
      %v403 = vunpack.c.l.b16 %v393
      %v404 = vunpack.c.l.b16 %v394
      %v405 = vpack.c.b16 %v402, %v401
      %v406 = vpack.c.b16 %v404, %v403
      %v410 = vsel %vm179, %v396, 0
      %412 = vmatprep.subr.bf16.mxu0 0
      %413 = vmatpush1.bf16.msra.mxu0 0
      %414 = vmatprep.subr.bf16.mxu0 0
      %415 = vmatpush1.bf16.msra.mxu0 0
      %416 = vmatprep.subr.bf16.mxu0 0
      %417 = vmatpush1.bf16.msra.mxu0 0
      %418 = vmatprep.subr.bf16.mxu0 0
      %419 = vmatpush1.bf16.msra.mxu0 0
      %420 = vmatprep.subr.bf16.mxu0 0
      %421 = vmatpush1.bf16.msra.mxu0 0
      %422 = vmatprep.subr.bf16.mxu0 0
      %423 = vmatpush1.bf16.msra.mxu0 0
      %424 = vmatprep.subr.bf16.mxu0 0
      %425 = vmatpush1.bf16.msra.mxu0 %v406
      %426 = vmatprep.subr.bf16.mxu0 0
      %427 = vmatpush1.bf16.msra.mxu0 %v405
      %428 = vmatprep.subr.bf16.mxu0 0
      %429 = vmatpush2.bf16.msra.mxu0 0
      %430 = vmatprep.subr.bf16.mxu0 0
      %431 = vmatpush2.bf16.msra.mxu0 0
      %432 = vmatprep.subr.bf16.mxu0 0
      %433 = vmatpush2.bf16.msra.mxu0 0
      %434 = vmatprep.subr.bf16.mxu0 0
      %435 = vmatpush2.bf16.msra.mxu0 0
      %436 = vmatprep.subr.bf16.mxu0 0
      %437 = vmatpush2.bf16.msra.mxu0 0
      %438 = vmatprep.subr.bf16.mxu0 0
      %439 = vmatpush2.bf16.msra.mxu0 0
      %440 = vmatprep.subr.bf16.mxu0 0
      %441 = vmatpush2.bf16.msra.mxu0 0
      %442 = vmatprep.subr.bf16.mxu0 0
      %443 = vmatpush2.bf16.msra.mxu0 0
      %444 = vmatprep.mubr.bf16.mxu0 0
      %445 = vmatmul.mubr.bf16.gmra.mxu0 %v410
      %v446 = vpop.f32.mrf.mxu0
      %v447 = vadd.f32 0.0, %v446
      %v448 = vpop.f32.mrf.mxu0
      %v449 = vpop.f32.mrf.mxu0
      %v450 = vadd.f32 0.0, %v449
      %v451 = vpop.f32.mrf.mxu0
      %452 = vdwg.mxu0
      %v453 = vpack.c.bf16 %v450, %v447
      %v455 = vunpack.c.l.b16 %v453
      %v456 = vunpack.c.h.b16 %v453
      %v457 = vpack.c.b16 %v455, %v455
      %v458 = vpack.c.b16 %v456, %v456
      %461 = vst.msk [vmem:[#allocation5] sm:$0xf] %vm297, %v457
      %462 = vst.msk [vmem:[#allocation5 + $0x4] sm:$0xf] %vm297, %v458
      %s463 = scalar_lea.vmem [#allocation13], 16
      %v464 = vld [vmem:[%s463] sm:$0xf]
      %v465 = vld [vmem:[%s463 + $0x4] sm:$0xf]
      %v466 = vld [vmem:[%s463 + $0x8] sm:$0xf]
      %v467 = vld [vmem:[%s463 + $0xc] sm:$0xf]
      %v472 = vunpack.c.l.b16 %v464
      %v473 = vunpack.c.l.b16 %v465
      %v474 = vunpack.c.l.b16 %v466
      %v475 = vunpack.c.l.b16 %v467
      %v476 = vpack.c.b16 %v473, %v472
      %v477 = vpack.c.b16 %v475, %v474
      %480 = vmatprep.subr.bf16.mxu0 0
      %481 = vmatpush1.bf16.msra.mxu0 0
      %482 = vmatprep.subr.bf16.mxu0 0
      %483 = vmatpush1.bf16.msra.mxu0 0
      %484 = vmatprep.subr.bf16.mxu0 0
      %485 = vmatpush1.bf16.msra.mxu0 0
      %486 = vmatprep.subr.bf16.mxu0 0
      %487 = vmatpush1.bf16.msra.mxu0 0
      %488 = vmatprep.subr.bf16.mxu0 0
      %489 = vmatpush1.bf16.msra.mxu0 0
      %490 = vmatprep.subr.bf16.mxu0 0
      %491 = vmatpush1.bf16.msra.mxu0 0
      %492 = vmatprep.subr.bf16.mxu0 0
      %493 = vmatpush1.bf16.msra.mxu0 %v477
      %494 = vmatprep.subr.bf16.mxu0 0
      %495 = vmatpush1.bf16.msra.mxu0 %v476
      %496 = vmatprep.subr.bf16.mxu0 0
      %497 = vmatpush2.bf16.msra.mxu0 0
      %498 = vmatprep.subr.bf16.mxu0 0
      %499 = vmatpush2.bf16.msra.mxu0 0
      %500 = vmatprep.subr.bf16.mxu0 0
      %501 = vmatpush2.bf16.msra.mxu0 0
      %502 = vmatprep.subr.bf16.mxu0 0
      %503 = vmatpush2.bf16.msra.mxu0 0
      %504 = vmatprep.subr.bf16.mxu0 0
      %505 = vmatpush2.bf16.msra.mxu0 0
      %506 = vmatprep.subr.bf16.mxu0 0
      %507 = vmatpush2.bf16.msra.mxu0 0
      %508 = vmatprep.subr.bf16.mxu0 0
      %509 = vmatpush2.bf16.msra.mxu0 0
      %510 = vmatprep.subr.bf16.mxu0 0
      %511 = vmatpush2.bf16.msra.mxu0 0
      %512 = vmatprep.mubr.bf16.mxu0 0
      %513 = vmatmul.mubr.bf16.gmra.mxu0 %v338
      %v514 = vpop.f32.mrf.mxu0
      %v515 = vadd.f32 0.0, %v514
      %v516 = vpop.f32.mrf.mxu0
      %v517 = vpop.f32.mrf.mxu0
      %v518 = vadd.f32 0.0, %v517
      %v519 = vpop.f32.mrf.mxu0
      %520 = vdwg.mxu0
      %v521 = vpack.c.bf16 %v518, %v515
      %v523 = vunpack.c.l.b16 %v521
      %v524 = vunpack.c.h.b16 %v521
      %v525 = vpack.c.b16 %v523, %v523
      %v526 = vpack.c.b16 %v524, %v524
      %s529 = scalar_lea.vmem [#allocation4], 8
      %530 = vst.msk [vmem:[%s529] sm:$0xf] %vm297, %v525
      %531 = vst.msk [vmem:[%s529 + $0x4] sm:$0xf] %vm297, %v526
      %s532 = scalar_lea.vmem [#allocation15], 16
      %v533 = vld [vmem:[%s532] sm:$0xf]
      %v534 = vld [vmem:[%s532 + $0x4] sm:$0xf]
      %v535 = vld [vmem:[%s532 + $0x8] sm:$0xf]
      %v536 = vld [vmem:[%s532 + $0xc] sm:$0xf]
      %v541 = vunpack.c.l.b16 %v533
      %v542 = vunpack.c.l.b16 %v534
      %v543 = vunpack.c.l.b16 %v535
      %v544 = vunpack.c.l.b16 %v536
      %v545 = vpack.c.b16 %v542, %v541
      %v546 = vpack.c.b16 %v544, %v543
      %549 = vmatprep.subr.bf16.mxu0 0
      %550 = vmatpush1.bf16.msra.mxu0 0
      %551 = vmatprep.subr.bf16.mxu0 0
      %552 = vmatpush1.bf16.msra.mxu0 0
      %553 = vmatprep.subr.bf16.mxu0 0
      %554 = vmatpush1.bf16.msra.mxu0 0
      %555 = vmatprep.subr.bf16.mxu0 0
      %556 = vmatpush1.bf16.msra.mxu0 0
      %557 = vmatprep.subr.bf16.mxu0 0
      %558 = vmatpush1.bf16.msra.mxu0 0
      %559 = vmatprep.subr.bf16.mxu0 0
      %560 = vmatpush1.bf16.msra.mxu0 0
      %561 = vmatprep.subr.bf16.mxu0 0
      %562 = vmatpush1.bf16.msra.mxu0 %v546
      %563 = vmatprep.subr.bf16.mxu0 0
      %564 = vmatpush1.bf16.msra.mxu0 %v545
      %565 = vmatprep.subr.bf16.mxu0 0
      %566 = vmatpush2.bf16.msra.mxu0 0
      %567 = vmatprep.subr.bf16.mxu0 0
      %568 = vmatpush2.bf16.msra.mxu0 0
      %569 = vmatprep.subr.bf16.mxu0 0
      %570 = vmatpush2.bf16.msra.mxu0 0
      %571 = vmatprep.subr.bf16.mxu0 0
      %572 = vmatpush2.bf16.msra.mxu0 0
      %573 = vmatprep.subr.bf16.mxu0 0
      %574 = vmatpush2.bf16.msra.mxu0 0
      %575 = vmatprep.subr.bf16.mxu0 0
      %576 = vmatpush2.bf16.msra.mxu0 0
      %577 = vmatprep.subr.bf16.mxu0 0
      %578 = vmatpush2.bf16.msra.mxu0 0
      %579 = vmatprep.subr.bf16.mxu0 0
      %580 = vmatpush2.bf16.msra.mxu0 0
      %581 = vmatprep.mubr.bf16.mxu0 0
      %582 = vmatmul.mubr.bf16.gmra.mxu0 %v410
      %v583 = vpop.f32.mrf.mxu0
      %v584 = vadd.f32 0.0, %v583
      %v585 = vpop.f32.mrf.mxu0
      %v586 = vpop.f32.mrf.mxu0
      %v587 = vadd.f32 0.0, %v586
      %v588 = vpop.f32.mrf.mxu0
      %589 = vdwg.mxu0
      %v590 = vpack.c.bf16 %v587, %v584
      %v592 = vunpack.c.l.b16 %v590
      %v593 = vunpack.c.h.b16 %v590
      %v594 = vpack.c.b16 %v592, %v592
      %v595 = vpack.c.b16 %v593, %v593
      %s598 = scalar_lea.vmem [#allocation5], 8
      %599 = vst.msk [vmem:[%s598] sm:$0xf] %vm297, %v594
      %600 = vst.msk [vmem:[%s598 + $0x4] sm:$0xf] %vm297, %v595
    $region57: #{tpu_custom_call.1} parent=1 // pred_fallthru
      _
    %s601 = smul.u32 0, 16
    %s602 = sshra.s32 %s601, 3
    %s603 = sand.u32 %s601, 7
    %s604 = smul.addr %s602, 4
    %s605 = scalar_lea.vmem [#allocation2], %s604
    %v606 = vld [vmem:[%s605] sm:$0xf]
    %v607 = vld [vmem:[%s605 + $0x4] sm:$0xf]
    %s608 = scalar_lea.vmem [#allocation3], %s601
    %v609 = vld [vmem:[%s608] sm:$0xff]
    %v610 = vld [vmem:[%s608 + $0x8] sm:$0xff]
    %v611 = vld [vmem:[%s2] sm:$0xff]
    %v612 = vld [vmem:[%s2 + $0x8] sm:$0xff]
    %v613 = vld [vmem:[#allocation10] sm:$0xff]
    %v614 = vld [vmem:[#allocation10 + $0x8] sm:$0xff]
    %v615 = vsub.f32 %v611, 1.0
    %v616 = vsub.f32 %v612, 1.0
    %v617 = vmul.f32 %v615, 1e+30
    %v618 = vmul.f32 %v616, 1e+30
    %vm619 = vcmp.eq.s32.totalorder %v613, 0
    %vm620 = vcmp.eq.s32.totalorder %v614, 0
    %v621 = vsel %vm619, 1, 0
    %v622 = vsel %vm620, 1, 0
    %v623 = vcvt.s32.f32 %v621
    %v624 = vcvt.s32.f32 %v622
    %vm625 = vcmp.eq.s32.totalorder %v613, 1
    %vm626 = vcmp.eq.s32.totalorder %v614, 1
    %v627 = vsel %vm625, 1, 0
    %v628 = vsel %vm626, 1, 0
    %v629 = vcvt.s32.f32 %v627
    %v630 = vcvt.s32.f32 %v628
    %v631 = vld [vmem:[#allocation4] sm:$0xf]
    %v632 = vld [vmem:[#allocation4 + $0x4] sm:$0xf]
    %s633 = scalar_lea.vmem [#allocation4], 8
    %v634 = vld [vmem:[%s633] sm:$0xf]
    %v635 = vld [vmem:[%s633 + $0x4] sm:$0xf]
    %v636 = vld [vmem:[#allocation5] sm:$0xf]
    %v637 = vld [vmem:[#allocation5 + $0x4] sm:$0xf]
    %s638 = scalar_lea.vmem [#allocation5], 8
    %v639 = vld [vmem:[%s638] sm:$0xf]
    %v640 = vld [vmem:[%s638 + $0x4] sm:$0xf]
    %v643 = vunpack.c.l.b16 %v631
    %v644 = vunpack.c.l.b16 %v632
    %v645 = vpack.c.b16 %v644, %v643
    %v648 = vunpack.c.l.b16 %v606
    %v649 = vunpack.c.l.b16 %v607
    %v650 = vpack.c.b16 %v649, %v648
    %vm651 = vcmask 130048
    %v653 = vsel %vm651, %v645, 0
    %v656 = vsel %vm651, %v650, 0
    %658 = vmatprep.subr.bf16.mxu0 0
    %659 = vmatpush1.bf16.xpose.msra.mxu0 0
    %660 = vmatprep.subr.bf16.mxu0 0
    %661 = vmatpush1.bf16.xpose.msra.mxu0 0
    %662 = vmatprep.subr.bf16.mxu0 0
    %663 = vmatpush1.bf16.xpose.msra.mxu0 0
    %664 = vmatprep.subr.bf16.mxu0 0
    %665 = vmatpush1.bf16.xpose.msra.mxu0 0
    %666 = vmatprep.subr.bf16.mxu0 0
    %667 = vmatpush1.bf16.xpose.msra.mxu0 0
    %668 = vmatprep.subr.bf16.mxu0 0
    %669 = vmatpush1.bf16.xpose.msra.mxu0 0
    %670 = vmatprep.subr.bf16.mxu0 0
    %671 = vmatpush1.bf16.xpose.msra.mxu0 0
    %672 = vmatprep.subr.bf16.mxu0 0
    %673 = vmatpush1.bf16.xpose.msra.mxu0 %v656
    %674 = vmatprep.subr.bf16.mxu0 0
    %675 = vmatpush2.bf16.xpose.msra.mxu0 0
    %676 = vmatprep.subr.bf16.mxu0 0
    %677 = vmatpush2.bf16.xpose.msra.mxu0 0
    %678 = vmatprep.subr.bf16.mxu0 0
    %679 = vmatpush2.bf16.xpose.msra.mxu0 0
    %680 = vmatprep.subr.bf16.mxu0 0
    %681 = vmatpush2.bf16.xpose.msra.mxu0 0
    %682 = vmatprep.subr.bf16.mxu0 0
    %683 = vmatpush2.bf16.xpose.msra.mxu0 0
    %684 = vmatprep.subr.bf16.mxu0 0
    %685 = vmatpush2.bf16.xpose.msra.mxu0 0
    %686 = vmatprep.subr.bf16.mxu0 0
    %687 = vmatpush2.bf16.xpose.msra.mxu0 0
    %688 = vmatprep.subr.bf16.mxu0 0
    %689 = vmatpush2.bf16.xpose.msra.mxu0 0
    %690 = vmatprep.mubr.bf16.mxu0 0
    %691 = vmatmul.mubr.bf16.gmra.mxu0 %v653
    %v692 = vpop.f32.mrf.mxu0
    %v693 = vadd.f32 0.0, %v692
    %v694 = vpop.f32.mrf.mxu0
    %v695 = vpop.f32.mrf.mxu0
    %v696 = vadd.f32 0.0, %v695
    %v697 = vpop.f32.mrf.mxu0
    %698 = vdwg.mxu0
    %v699 = vmul.f32 %v693, %v623
    %v700 = vmul.f32 %v696, %v624
    %v701 = vadd.f32 %v617, %v699
    %v702 = vadd.f32 %v618, %v700
    %v705 = vunpack.c.l.b16 %v634
    %v706 = vunpack.c.l.b16 %v635
    %v707 = vpack.c.b16 %v706, %v705
    %v709 = vsel %vm651, %v707, 0
    %711 = vmatprep.subr.bf16.mxu0 0
    %712 = vmatpush1.bf16.xpose.msra.mxu0 0
    %713 = vmatprep.subr.bf16.mxu0 0
    %714 = vmatpush1.bf16.xpose.msra.mxu0 0
    %715 = vmatprep.subr.bf16.mxu0 0
    %716 = vmatpush1.bf16.xpose.msra.mxu0 0
    %717 = vmatprep.subr.bf16.mxu0 0
    %718 = vmatpush1.bf16.xpose.msra.mxu0 0
    %719 = vmatprep.subr.bf16.mxu0 0
    %720 = vmatpush1.bf16.xpose.msra.mxu0 0
    %721 = vmatprep.subr.bf16.mxu0 0
    %722 = vmatpush1.bf16.xpose.msra.mxu0 0
    %723 = vmatprep.subr.bf16.mxu0 0
    %724 = vmatpush1.bf16.xpose.msra.mxu0 0
    %725 = vmatprep.subr.bf16.mxu0 0
    %726 = vmatpush1.bf16.xpose.msra.mxu0 %v656
    %727 = vmatprep.subr.bf16.mxu0 0
    %728 = vmatpush2.bf16.xpose.msra.mxu0 0
    %729 = vmatprep.subr.bf16.mxu0 0
    %730 = vmatpush2.bf16.xpose.msra.mxu0 0
    %731 = vmatprep.subr.bf16.mxu0 0
    %732 = vmatpush2.bf16.xpose.msra.mxu0 0
    %733 = vmatprep.subr.bf16.mxu0 0
    %734 = vmatpush2.bf16.xpose.msra.mxu0 0
    %735 = vmatprep.subr.bf16.mxu0 0
    %736 = vmatpush2.bf16.xpose.msra.mxu0 0
    %737 = vmatprep.subr.bf16.mxu0 0
    %738 = vmatpush2.bf16.xpose.msra.mxu0 0
    %739 = vmatprep.subr.bf16.mxu0 0
    %740 = vmatpush2.bf16.xpose.msra.mxu0 0
    %741 = vmatprep.subr.bf16.mxu0 0
    %742 = vmatpush2.bf16.xpose.msra.mxu0 0
    %743 = vmatprep.mubr.bf16.mxu0 0
    %744 = vmatmul.mubr.bf16.gmra.mxu0 %v709
    %v745 = vpop.f32.mrf.mxu0
    %v746 = vadd.f32 0.0, %v745
    %v747 = vpop.f32.mrf.mxu0
    %v748 = vpop.f32.mrf.mxu0
    %v749 = vadd.f32 0.0, %v748
    %v750 = vpop.f32.mrf.mxu0
    %751 = vdwg.mxu0
    %v752 = vmul.f32 %v746, %v629
    %v753 = vmul.f32 %v749, %v630
    %v754 = vadd.f32 %v701, %v752
    %v755 = vadd.f32 %v702, %v753
    %v756 = vsel %vm651, %v754, -inf
    %v757 = vsel %vm651, %v755, -inf
    %v758 = vmax.f32 %v756, %v757
    %v759 = vrot.slane %v758, 4
    %v760 = vmax.f32 %v758, %v759
    %v761 = vrot.slane %v760, 2
    %v762 = vmax.f32 %v760, %v761
    %v763 = vrot.slane %v762, 1
    %v764 = vmax.f32 %v762, %v763
    %v765 = vsub.f32 %v754, %v764
    %v766 = vsub.f32 %v755, %v764
    %v767 = vmul.f32 %v765, 1.442695
    %v768 = vpow.pop %v767
    %v769 = vmul.f32 %v766, 1.442695
    %v770 = vpow.pop %v769
    %v771 = vmul.f32 %v768, %v611
    %v772 = vmul.f32 %v770, %v612
    %v773 = vsel %vm651, %v771, 0.0
    %v774 = vsel %vm651, %v772, 0.0
    %v775 = vadd.f32 %v773, %v774
    %v776 = vrot.slane %v775, 4
    %v777 = vadd.f32 %v775, %v776
    %v778 = vrot.slane %v777, 2
    %v779 = vadd.f32 %v777, %v778
    %v780 = vrot.slane %v779, 1
    %v781 = vadd.f32 %v779, %v780
    %v782 = vmax.f32 %v781, 1e-30
    %v783 = vrcp.pop %v782
    %v784 = vmul.f32 %v771, %v783
    %v785 = vmul.f32 %v772, %v783
    %v786 = vmul.f32 %v784, %v623
    %v787 = vmul.f32 %v785, %v624
    %v788 = vpack.c.bf16 %v787, %v786
    %v789 = vmul.f32 %v784, %v629
    %v790 = vmul.f32 %v785, %v630
    %v791 = vpack.c.bf16 %v790, %v789
    %792 = vxpose.xlu0.c.b16.start [1/8] %v791, 128
    %793 = vxpose.xlu0.c.b16.cont [2/8] 0, 128
    %794 = vxpose.xlu0.c.b16.cont [3/8] 0, 128
    %795 = vxpose.xlu0.c.b16.cont [4/8] 0, 128
    %796 = vxpose.xlu0.c.b16.cont [5/8] 0, 128
    %797 = vxpose.xlu0.c.b16.cont [6/8] 0, 128
    %798 = vxpose.xlu0.c.b16.cont [7/8] 0, 128
    %799 = vxpose.xlu0.c.b16.end [8/8] 0, 128
    %v800 = vpop.trf.xlu0
    %v801 = vpop.trf.xlu0
    %v802 = vpop.trf.xlu0
    %v803 = vpop.trf.xlu0
    %v804 = vpop.trf.xlu0
    %v805 = vpop.trf.xlu0
    %v806 = vpop.trf.xlu0
    %v807 = vpop.trf.xlu0
    %v810 = vunpack.c.l.b16 %v639
    %v811 = vunpack.c.l.b16 %v640
    %v812 = vpack.c.b16 %v811, %v810
    %v815 = vsel %vm651, %v800, 0
    %817 = vmatprep.subr.bf16.mxu0 0
    %818 = vmatpush1.bf16.msra.mxu0 0
    %819 = vmatprep.subr.bf16.mxu0 0
    %820 = vmatpush1.bf16.msra.mxu0 0
    %821 = vmatprep.subr.bf16.mxu0 0
    %822 = vmatpush1.bf16.msra.mxu0 0
    %823 = vmatprep.subr.bf16.mxu0 0
    %824 = vmatpush1.bf16.msra.mxu0 0
    %825 = vmatprep.subr.bf16.mxu0 0
    %826 = vmatpush1.bf16.msra.mxu0 0
    %827 = vmatprep.subr.bf16.mxu0 0
    %828 = vmatpush1.bf16.msra.mxu0 0
    %829 = vmatprep.subr.bf16.mxu0 0
    %830 = vmatpush1.bf16.msra.mxu0 0
    %831 = vmatprep.subr.bf16.mxu0 0
    %832 = vmatpush1.bf16.msra.mxu0 %v812
    %833 = vmatprep.subr.bf16.mxu0 0
    %834 = vmatpush2.bf16.msra.mxu0 0
    %835 = vmatprep.subr.bf16.mxu0 0
    %836 = vmatpush2.bf16.msra.mxu0 0
    %837 = vmatprep.subr.bf16.mxu0 0
    %838 = vmatpush2.bf16.msra.mxu0 0
    %839 = vmatprep.subr.bf16.mxu0 0
    %840 = vmatpush2.bf16.msra.mxu0 0
    %841 = vmatprep.subr.bf16.mxu0 0
    %842 = vmatpush2.bf16.msra.mxu0 0
    %843 = vmatprep.subr.bf16.mxu0 0
    %844 = vmatpush2.bf16.msra.mxu0 0
    %845 = vmatprep.subr.bf16.mxu0 0
    %846 = vmatpush2.bf16.msra.mxu0 0
    %847 = vmatprep.subr.bf16.mxu0 0
    %848 = vmatpush2.bf16.msra.mxu0 0
    %849 = vmatprep.mubr.bf16.mxu0 0
    %850 = vmatmul.mubr.bf16.gmra.mxu0 %v815
    %v851 = vpop.f32.mrf.mxu0
    %v852 = vadd.f32 0.0, %v851
    %v853 = vpop.f32.mrf.mxu0
    %v854 = vpop.f32.mrf.mxu0
    %v855 = vadd.f32 0.0, %v854
    %v856 = vpop.f32.mrf.mxu0
    %857 = vdwg.mxu0
    %858 = vxpose.xlu0.c.b16.start [1/8] %v788, 128
    %859 = vxpose.xlu0.c.b16.cont [2/8] 0, 128
    %860 = vxpose.xlu0.c.b16.cont [3/8] 0, 128
    %861 = vxpose.xlu0.c.b16.cont [4/8] 0, 128
    %862 = vxpose.xlu0.c.b16.cont [5/8] 0, 128
    %863 = vxpose.xlu0.c.b16.cont [6/8] 0, 128
    %864 = vxpose.xlu0.c.b16.cont [7/8] 0, 128
    %865 = vxpose.xlu0.c.b16.end [8/8] 0, 128
    %v866 = vpop.trf.xlu0
    %v867 = vpop.trf.xlu0
    %v868 = vpop.trf.xlu0
    %v869 = vpop.trf.xlu0
    %v870 = vpop.trf.xlu0
    %v871 = vpop.trf.xlu0
    %v872 = vpop.trf.xlu0
    %v873 = vpop.trf.xlu0
    %v876 = vunpack.c.l.b16 %v636
    %v877 = vunpack.c.l.b16 %v637
    %v878 = vpack.c.b16 %v877, %v876
    %v881 = vsel %vm651, %v866, 0
    %883 = vmatprep.subr.bf16.mxu0 0
    %884 = vmatpush1.bf16.msra.mxu0 0
    %885 = vmatprep.subr.bf16.mxu0 0
    %886 = vmatpush1.bf16.msra.mxu0 0
    %887 = vmatprep.subr.bf16.mxu0 0
    %888 = vmatpush1.bf16.msra.mxu0 0
    %889 = vmatprep.subr.bf16.mxu0 0
    %890 = vmatpush1.bf16.msra.mxu0 0
    %891 = vmatprep.subr.bf16.mxu0 0
    %892 = vmatpush1.bf16.msra.mxu0 0
    %893 = vmatprep.subr.bf16.mxu0 0
    %894 = vmatpush1.bf16.msra.mxu0 0
    %895 = vmatprep.subr.bf16.mxu0 0
    %896 = vmatpush1.bf16.msra.mxu0 0
    %897 = vmatprep.subr.bf16.mxu0 0
    %898 = vmatpush1.bf16.msra.mxu0 %v878
    %899 = vmatprep.subr.bf16.mxu0 0
    %900 = vmatpush2.bf16.msra.mxu0 0
    %901 = vmatprep.subr.bf16.mxu0 0
    %902 = vmatpush2.bf16.msra.mxu0 0
    %903 = vmatprep.subr.bf16.mxu0 0
    %904 = vmatpush2.bf16.msra.mxu0 0
    %905 = vmatprep.subr.bf16.mxu0 0
    %906 = vmatpush2.bf16.msra.mxu0 0
    %907 = vmatprep.subr.bf16.mxu0 0
    %908 = vmatpush2.bf16.msra.mxu0 0
    %909 = vmatprep.subr.bf16.mxu0 0
    %910 = vmatpush2.bf16.msra.mxu0 0
    %911 = vmatprep.subr.bf16.mxu0 0
    %912 = vmatpush2.bf16.msra.mxu0 0
    %913 = vmatprep.subr.bf16.mxu0 0
    %914 = vmatpush2.bf16.msra.mxu0 0
    %915 = vmatprep.mubr.bf16.mxu0 0
    %916 = vmatmul.mubr.bf16.gmra.mxu0 %v881
    %v917 = vpop.f32.mrf.mxu0
    %v918 = vadd.f32 %v852, %v917
    %v919 = vpop.f32.mrf.mxu0
    %v920 = vpop.f32.mrf.mxu0
    %v921 = vadd.f32 %v855, %v920
    %v922 = vpop.f32.mrf.mxu0
    %923 = vdwg.mxu0
    %924 = vst.msk [vmem:[#allocation6] sm:$0xff] %vm651, %v918
    %925 = vst.msk [vmem:[#allocation6 + $0x8] sm:$0xff] %vm651, %v921
    %926 = vrot.lane.b32.xlu0 %v645, 112
    %v927 = vpop.permute.xlu0 %926
    %928 = vrot.lane.b32.xlu0 %v650, 112
    %v929 = vpop.permute.xlu0 %928
    %v931 = vsel %vm651, %v927, 0
    %v934 = vsel %vm651, %v929, 0
    %936 = vmatprep.subr.bf16.mxu0 0
    %937 = vmatpush1.bf16.xpose.msra.mxu0 0
    %938 = vmatprep.subr.bf16.mxu0 0
    %939 = vmatpush1.bf16.xpose.msra.mxu0 0
    %940 = vmatprep.subr.bf16.mxu0 0
    %941 = vmatpush1.bf16.xpose.msra.mxu0 0
    %942 = vmatprep.subr.bf16.mxu0 0
    %943 = vmatpush1.bf16.xpose.msra.mxu0 0
    %944 = vmatprep.subr.bf16.mxu0 0
    %945 = vmatpush1.bf16.xpose.msra.mxu0 0
    %946 = vmatprep.subr.bf16.mxu0 0
    %947 = vmatpush1.bf16.xpose.msra.mxu0 0
    %948 = vmatprep.subr.bf16.mxu0 0
    %949 = vmatpush1.bf16.xpose.msra.mxu0 0
    %950 = vmatprep.subr.bf16.mxu0 0
    %951 = vmatpush1.bf16.xpose.msra.mxu0 %v934
    %952 = vmatprep.subr.bf16.mxu0 0
    %953 = vmatpush2.bf16.xpose.msra.mxu0 0
    %954 = vmatprep.subr.bf16.mxu0 0
    %955 = vmatpush2.bf16.xpose.msra.mxu0 0
    %956 = vmatprep.subr.bf16.mxu0 0
    %957 = vmatpush2.bf16.xpose.msra.mxu0 0
    %958 = vmatprep.subr.bf16.mxu0 0
    %959 = vmatpush2.bf16.xpose.msra.mxu0 0
    %960 = vmatprep.subr.bf16.mxu0 0
    %961 = vmatpush2.bf16.xpose.msra.mxu0 0
    %962 = vmatprep.subr.bf16.mxu0 0
    %963 = vmatpush2.bf16.xpose.msra.mxu0 0
    %964 = vmatprep.subr.bf16.mxu0 0
    %965 = vmatpush2.bf16.xpose.msra.mxu0 0
    %966 = vmatprep.subr.bf16.mxu0 0
    %967 = vmatpush2.bf16.xpose.msra.mxu0 0
    %968 = vmatprep.mubr.bf16.mxu0 0
    %969 = vmatmul.mubr.bf16.gmra.mxu0 %v931
    %v970 = vpop.f32.mrf.mxu0
    %v971 = vadd.f32 0.0, %v970
    %v972 = vpop.f32.mrf.mxu0
    %v973 = vpop.f32.mrf.mxu0
    %v974 = vadd.f32 0.0, %v973
    %v975 = vpop.f32.mrf.mxu0
    %976 = vdwg.mxu0
    %v977 = vmul.f32 %v971, %v623
    %v978 = vmul.f32 %v974, %v624
    %v979 = vadd.f32 %v617, %v977
    %v980 = vadd.f32 %v618, %v978
    %981 = vrot.lane.b32.xlu0 %v707, 112
    %v982 = vpop.permute.xlu0 %981
    %v984 = vsel %vm651, %v982, 0
    %986 = vmatprep.subr.bf16.mxu0 0
    %987 = vmatpush1.bf16.xpose.msra.mxu0 0
    %988 = vmatprep.subr.bf16.mxu0 0
    %989 = vmatpush1.bf16.xpose.msra.mxu0 0
    %990 = vmatprep.subr.bf16.mxu0 0
    %991 = vmatpush1.bf16.xpose.msra.mxu0 0
    %992 = vmatprep.subr.bf16.mxu0 0
    %993 = vmatpush1.bf16.xpose.msra.mxu0 0
    %994 = vmatprep.subr.bf16.mxu0 0
    %995 = vmatpush1.bf16.xpose.msra.mxu0 0
    %996 = vmatprep.subr.bf16.mxu0 0
    %997 = vmatpush1.bf16.xpose.msra.mxu0 0
    %998 = vmatprep.subr.bf16.mxu0 0
    %999 = vmatpush1.bf16.xpose.msra.mxu0 0
    %1000 = vmatprep.subr.bf16.mxu0 0
    %1001 = vmatpush1.bf16.xpose.msra.mxu0 %v934
    %1002 = vmatprep.subr.bf16.mxu0 0
    %1003 = vmatpush2.bf16.xpose.msra.mxu0 0
    %1004 = vmatprep.subr.bf16.mxu0 0
    %1005 = vmatpush2.bf16.xpose.msra.mxu0 0
    %1006 = vmatprep.subr.bf16.mxu0 0
    %1007 = vmatpush2.bf16.xpose.msra.mxu0 0
    %1008 = vmatprep.subr.bf16.mxu0 0
    %1009 = vmatpush2.bf16.xpose.msra.mxu0 0
    %1010 = vmatprep.subr.bf16.mxu0 0
    %1011 = vmatpush2.bf16.xpose.msra.mxu0 0
    %1012 = vmatprep.subr.bf16.mxu0 0
    %1013 = vmatpush2.bf16.xpose.msra.mxu0 0
    %1014 = vmatprep.subr.bf16.mxu0 0
    %1015 = vmatpush2.bf16.xpose.msra.mxu0 0
    %1016 = vmatprep.subr.bf16.mxu0 0
    %1017 = vmatpush2.bf16.xpose.msra.mxu0 0
    %1018 = vmatprep.mubr.bf16.mxu0 0
    %1019 = vmatmul.mubr.bf16.gmra.mxu0 %v984
    %v1020 = vpop.f32.mrf.mxu0
    %v1021 = vadd.f32 0.0, %v1020
    %v1022 = vpop.f32.mrf.mxu0
    %v1023 = vpop.f32.mrf.mxu0
    %v1024 = vadd.f32 0.0, %v1023
    %v1025 = vpop.f32.mrf.mxu0
    %1026 = vdwg.mxu0
    %v1027 = vmul.f32 %v1021, %v629
    %v1028 = vmul.f32 %v1024, %v630
    %v1029 = vadd.f32 %v979, %v1027
    %v1030 = vadd.f32 %v980, %v1028
    %v1031 = vsel %vm651, %v1029, -inf
    %v1032 = vsel %vm651, %v1030, -inf
    %v1033 = vmax.f32 %v1031, %v1032
    %v1034 = vrot.slane %v1033, 4
    %v1035 = vmax.f32 %v1033, %v1034
    %v1036 = vrot.slane %v1035, 2
    %v1037 = vmax.f32 %v1035, %v1036
    %v1038 = vrot.slane %v1037, 1
    %v1039 = vmax.f32 %v1037, %v1038
    %v1040 = vsub.f32 %v1029, %v1039
    %v1041 = vsub.f32 %v1030, %v1039
    %v1042 = vmul.f32 %v1040, 1.442695
    %v1043 = vpow.pop %v1042
    %v1044 = vmul.f32 %v1041, 1.442695
    %v1045 = vpow.pop %v1044
    %v1046 = vmul.f32 %v1043, %v611
    %v1047 = vmul.f32 %v1045, %v612
    %v1048 = vsel %vm651, %v1046, 0.0
    %v1049 = vsel %vm651, %v1047, 0.0
    %v1050 = vadd.f32 %v1048, %v1049
    %v1051 = vrot.slane %v1050, 4
    %v1052 = vadd.f32 %v1050, %v1051
    %v1053 = vrot.slane %v1052, 2
    %v1054 = vadd.f32 %v1052, %v1053
    %v1055 = vrot.slane %v1054, 1
    %v1056 = vadd.f32 %v1054, %v1055
    %v1057 = vmax.f32 %v1056, 1e-30
    %v1058 = vrcp.pop %v1057
    %v1059 = vmul.f32 %v1046, %v1058
    %v1060 = vmul.f32 %v1047, %v1058
    %v1061 = vmul.f32 %v1059, %v623
    %v1062 = vmul.f32 %v1060, %v624
    %v1063 = vpack.c.bf16 %v1062, %v1061
    %v1064 = vmul.f32 %v1059, %v629
    %v1065 = vmul.f32 %v1060, %v630
    %v1066 = vpack.c.bf16 %v1065, %v1064
    %1067 = vxpose.xlu0.c.b16.start [1/8] %v1066, 128
    %1068 = vxpose.xlu0.c.b16.cont [2/8] 0, 128
    %1069 = vxpose.xlu0.c.b16.cont [3/8] 0, 128
    %1070 = vxpose.xlu0.c.b16.cont [4/8] 0, 128
    %1071 = vxpose.xlu0.c.b16.cont [5/8] 0, 128
    %1072 = vxpose.xlu0.c.b16.cont [6/8] 0, 128
    %1073 = vxpose.xlu0.c.b16.cont [7/8] 0, 128
    %1074 = vxpose.xlu0.c.b16.end [8/8] 0, 128
    %v1075 = vpop.trf.xlu0
    %v1076 = vpop.trf.xlu0
    %v1077 = vpop.trf.xlu0
    %v1078 = vpop.trf.xlu0
    %v1079 = vpop.trf.xlu0
    %v1080 = vpop.trf.xlu0
    %v1081 = vpop.trf.xlu0
    %v1082 = vpop.trf.xlu0
    %1083 = vrot.lane.b32.xlu0 %v812, 112
    %v1084 = vpop.permute.xlu0 %1083
    %v1087 = vsel %vm651, %v1075, 0
    %1089 = vmatprep.subr.bf16.mxu0 0
    %1090 = vmatpush1.bf16.msra.mxu0 0
    %1091 = vmatprep.subr.bf16.mxu0 0
    %1092 = vmatpush1.bf16.msra.mxu0 0
    %1093 = vmatprep.subr.bf16.mxu0 0
    %1094 = vmatpush1.bf16.msra.mxu0 0
    %1095 = vmatprep.subr.bf16.mxu0 0
    %1096 = vmatpush1.bf16.msra.mxu0 0
    %1097 = vmatprep.subr.bf16.mxu0 0
    %1098 = vmatpush1.bf16.msra.mxu0 0
    %1099 = vmatprep.subr.bf16.mxu0 0
    %1100 = vmatpush1.bf16.msra.mxu0 0
    %1101 = vmatprep.subr.bf16.mxu0 0
    %1102 = vmatpush1.bf16.msra.mxu0 0
    %1103 = vmatprep.subr.bf16.mxu0 0
    %1104 = vmatpush1.bf16.msra.mxu0 %v1084
    %1105 = vmatprep.subr.bf16.mxu0 0
    %1106 = vmatpush2.bf16.msra.mxu0 0
    %1107 = vmatprep.subr.bf16.mxu0 0
    %1108 = vmatpush2.bf16.msra.mxu0 0
    %1109 = vmatprep.subr.bf16.mxu0 0
    %1110 = vmatpush2.bf16.msra.mxu0 0
    %1111 = vmatprep.subr.bf16.mxu0 0
    %1112 = vmatpush2.bf16.msra.mxu0 0
    %1113 = vmatprep.subr.bf16.mxu0 0
    %1114 = vmatpush2.bf16.msra.mxu0 0
    %1115 = vmatprep.subr.bf16.mxu0 0
    %1116 = vmatpush2.bf16.msra.mxu0 0
    %1117 = vmatprep.subr.bf16.mxu0 0
    %1118 = vmatpush2.bf16.msra.mxu0 0
    %1119 = vmatprep.subr.bf16.mxu0 0
    %1120 = vmatpush2.bf16.msra.mxu0 0
    %1121 = vmatprep.mubr.bf16.mxu0 0
    %1122 = vmatmul.mubr.bf16.gmra.mxu0 %v1087
    %v1123 = vpop.f32.mrf.mxu0
    %v1124 = vadd.f32 0.0, %v1123
    %v1125 = vpop.f32.mrf.mxu0
    %v1126 = vpop.f32.mrf.mxu0
    %v1127 = vadd.f32 0.0, %v1126
    %v1128 = vpop.f32.mrf.mxu0
    %1129 = vdwg.mxu0
    %1130 = vxpose.xlu0.c.b16.start [1/8] %v1063, 128
    %1131 = vxpose.xlu0.c.b16.cont [2/8] 0, 128
    %1132 = vxpose.xlu0.c.b16.cont [3/8] 0, 128
    %1133 = vxpose.xlu0.c.b16.cont [4/8] 0, 128
    %1134 = vxpose.xlu0.c.b16.cont [5/8] 0, 128
    %1135 = vxpose.xlu0.c.b16.cont [6/8] 0, 128
    %1136 = vxpose.xlu0.c.b16.cont [7/8] 0, 128
    %1137 = vxpose.xlu0.c.b16.end [8/8] 0, 128
    %v1138 = vpop.trf.xlu0
    %v1139 = vpop.trf.xlu0
    %v1140 = vpop.trf.xlu0
    %v1141 = vpop.trf.xlu0
    %v1142 = vpop.trf.xlu0
    %v1143 = vpop.trf.xlu0
    %v1144 = vpop.trf.xlu0
    %v1145 = vpop.trf.xlu0
    %1146 = vrot.lane.b32.xlu0 %v878, 112
    %v1147 = vpop.permute.xlu0 %1146
    %v1150 = vsel %vm651, %v1138, 0
    %1152 = vmatprep.subr.bf16.mxu0 0
    %1153 = vmatpush1.bf16.msra.mxu0 0
    %1154 = vmatprep.subr.bf16.mxu0 0
    %1155 = vmatpush1.bf16.msra.mxu0 0
    %1156 = vmatprep.subr.bf16.mxu0 0
    %1157 = vmatpush1.bf16.msra.mxu0 0
    %1158 = vmatprep.subr.bf16.mxu0 0
    %1159 = vmatpush1.bf16.msra.mxu0 0
    %1160 = vmatprep.subr.bf16.mxu0 0
    %1161 = vmatpush1.bf16.msra.mxu0 0
    %1162 = vmatprep.subr.bf16.mxu0 0
    %1163 = vmatpush1.bf16.msra.mxu0 0
    %1164 = vmatprep.subr.bf16.mxu0 0
    %1165 = vmatpush1.bf16.msra.mxu0 0
    %1166 = vmatprep.subr.bf16.mxu0 0
    %1167 = vmatpush1.bf16.msra.mxu0 %v1147
    %1168 = vmatprep.subr.bf16.mxu0 0
    %1169 = vmatpush2.bf16.msra.mxu0 0
    %1170 = vmatprep.subr.bf16.mxu0 0
    %1171 = vmatpush2.bf16.msra.mxu0 0
    %1172 = vmatprep.subr.bf16.mxu0 0
    %1173 = vmatpush2.bf16.msra.mxu0 0
    %1174 = vmatprep.subr.bf16.mxu0 0
    %1175 = vmatpush2.bf16.msra.mxu0 0
    %1176 = vmatprep.subr.bf16.mxu0 0
    %1177 = vmatpush2.bf16.msra.mxu0 0
    %1178 = vmatprep.subr.bf16.mxu0 0
    %1179 = vmatpush2.bf16.msra.mxu0 0
    %1180 = vmatprep.subr.bf16.mxu0 0
    %1181 = vmatpush2.bf16.msra.mxu0 0
    %1182 = vmatprep.subr.bf16.mxu0 0
    %1183 = vmatpush2.bf16.msra.mxu0 0
    %1184 = vmatprep.mubr.bf16.mxu0 0
    %1185 = vmatmul.mubr.bf16.gmra.mxu0 %v1150
    %v1186 = vpop.f32.mrf.mxu0
    %v1187 = vadd.f32 %v1124, %v1186
    %v1188 = vpop.f32.mrf.mxu0
    %v1189 = vpop.f32.mrf.mxu0
    %v1190 = vadd.f32 %v1127, %v1189
    %v1191 = vpop.f32.mrf.mxu0
    %1192 = vdwg.mxu0
    %1195 = vrot.lane.b32.xlu0 %v1187, 16
    %v1196 = vpop.permute.xlu0 %1195
    %1197 = vrot.lane.b32.xlu0 %v1190, 16
    %v1198 = vpop.permute.xlu0 %1197
    %vm1201 = vcmask 261248
    %1202 = vst.msk [vmem:[#allocation6] sm:$0xff] %vm1201, %v1196
    %1203 = vst.msk [vmem:[#allocation6 + $0x8] sm:$0xff] %vm1201, %v1198
    %v1204 = vld [vmem:[#allocation6] sm:$0xff]
    %v1205 = vld [vmem:[#allocation6 + $0x8] sm:$0xff]
    %v1206 = vadd.f32 %v1204, %v609
    %v1207 = vadd.f32 %v1205, %v610
    %v1208 = vmax.f32 %v1206, 0.0
    %v1209 = vmax.f32 %v1207, 0.0
    %vm1210 = vcmask 261120
    %1211 = vst.msk [vmem:[#allocation16] sm:$0xff] %vm1210, %v1208
    %1212 = vst.msk [vmem:[#allocation16 + $0x8] sm:$0xff] %vm1210, %v1209
    // Predicated region
    $region58: #{tpu_custom_call.1} parent=1 // pred_check
      _
    $region59: #{tpu_custom_call.1} parent=1 // pred_check_branch
      %1214 = sbr.rel (0) target = $region61
    $region60: #{tpu_custom_call.1} parent=1 // pred_region
      %s1216 = ssub.s32 256, 256
      %1217 = vsyncadd [#allocation9], %s1216
      %s1218 = sshll.u32 [#allocation16], 4
      %s1219 = int_to_ptr.vmem [resolvable:$true] %s1218
      %1224 = dma.vmem_to_hbm [thread:$0]  %s1219, 256, %s8, [#allocation9], 128, 128, 8
    $region61: #{tpu_custom_call.1} parent=1 // pred_fallthru
      _
    // Predicated region
    $region62: #{tpu_custom_call.1} parent=1 // pred_check
      _
    $region63: #{tpu_custom_call.1} parent=1 // pred_check_branch
      %1226 = sbr.rel (0) target = $region65
    $region64: #{tpu_custom_call.1} parent=1 // pred_region
      %1227 = dma.done [#allocation9], 256
    $region65: #{tpu_custom_call.1} parent=1 // pred_fallthru
      _
    %1228 = vsyncpa [#allocation8], 1
    %1229 = vsyncpa [#allocation11], 1
    %1230 = vsyncpa [#allocation14], 1
    %1231 = vsyncpa [#allocation9], 1

</llo_original>
